<compile_context>
chip_gen: v7x
topology: tpu7x:2x2x1
jax: 0.10.0
libtpu: 0.0.40
codegen_flags: <defaults>
</compile_context>

<pallas_src>
import jax
import jax.numpy as jnp
from jax.experimental import pallas as pl
from jax.experimental.pallas import tpu as pltpu

_PACK = 8  # tokens packed per slab row -> x rows are 8*32 = 256 lanes wide


def _mlp_kernel(x_ref, w1_ref, w2_ref, o_ref):
    # x_ref:  [tile, Din ]  (packed-)token tile
    # w1_ref: [Din,  Dh  ]  fc1.weight^T (block-diag if packed), VMEM-resident
    # w2_ref: [Dh,   Dout]  fc2.weight^T (block-diag if packed), VMEM-resident
    # o_ref:  [tile, Dout]
    h = jnp.dot(x_ref[...], w1_ref[...],
                preferred_element_type=jnp.float32,
                precision=jax.lax.Precision.HIGHEST)
    h = jnp.maximum(h, 0.0)  # ReLU on the f32 accumulator (VPU)
    out = jnp.dot(h, w2_ref[...],
                  preferred_element_type=jnp.float32,
                  precision=jax.lax.Precision.HIGHEST)
    o_ref[...] = out.astype(o_ref.dtype)


def prepare_params(fc1_weight, fc2_weight, pack=_PACK):
    """One-time parameter prep (parameter-init time, NOT per forward call).

    fc1_weight: [H, D] (nn.Linear layout), fc2_weight: [V, H].
    Builds the transposed weights plus lane-packed block-diagonal variants:
        w1_bd = kron(I_pack, fc1.weight^T)   [pack*D, pack*H]
        w2_bd = kron(I_pack, fc2.weight^T)   [pack*H, pack*V]
    """
    w1_t = jnp.asarray(fc1_weight.T)  # [D, H]
    w2_t = jnp.asarray(fc2_weight.T)  # [H, V]
    eye = jnp.eye(pack, dtype=w1_t.dtype)
    return {
        "w1_t": w1_t,
        "w2_t": w2_t,
        "w1_bd": jnp.kron(eye, w1_t),
        "w2_bd": jnp.kron(eye, w2_t),
        "pack": pack,
    }


def _choose_row_tile(rows, tm_max):
    """Row tile for the 2-D slab.

    Tiny problems get a single full-array block (block dim == array dim is
    always a legal TPU block shape).  Otherwise aim for an even number of
    grid steps >= 2 (so v7x's second TensorCore gets work under
    dimension_semantics=("parallel",)) with the tile a multiple of 8 and
    capped at tm_max.
    """
    if rows < 16:
        return rows
    n_steps = max(2, -(-rows // tm_max))
    if n_steps % 2:
        n_steps += 1
    tile = -(-rows // n_steps)
    tile = ((tile + 7) // 8) * 8
    return max(8, min(tile, tm_max))


def binary_classifier_forward(x, params, *, tm=2048):
    """Fused bias-free MLP forward (== MyBinaryClassifier.forward).

    x:      [B, S, D] activations (common_embedding).
    params: dict from prepare_params (pre-transposed / pre-packed weights).
    tm:     max row tile of the 2-D slab (packed rows when M % pack == 0).
    Returns logits [B, S, V].
    """
    B, S, D = x.shape
    H = params["w1_t"].shape[1]
    V = params["w2_t"].shape[1]
    pack = params["pack"]
    M = B * S

    if M % pack == 0:
        # Lane-packed path: pure row-major relabel, zero data movement.
        rows = M // pack
        x2d = x.reshape(rows, pack * D)
        w1, w2 = params["w1_bd"], params["w2_bd"]
        out_cols = pack * V
    else:
        # TODO(synk): fallback is only 25% lane-utilized on x and does a
        # 4/128-lane masked output store; hit only when B*S % 8 != 0.
        rows = M
        x2d = x.reshape(M, D)
        w1, w2 = params["w1_t"], params["w2_t"]
        out_cols = V

    in_cols = x2d.shape[1]
    tile = _choose_row_tile(rows, tm)
    grid = (pl.cdiv(rows, tile),)  # ragged last block handled by Pallas

    out2d = pl.pallas_call(
        _mlp_kernel,
        out_shape=jax.ShapeDtypeStruct((rows, out_cols), x.dtype),
        grid_spec=pltpu.PrefetchScalarGridSpec(
            num_scalar_prefetch=0,
            grid=grid,
            in_specs=[
                pl.BlockSpec((tile, in_cols), lambda i: (i, 0)),  # token tile
                pl.BlockSpec(w1.shape, lambda i: (0, 0)),  # VMEM-resident W1
                pl.BlockSpec(w2.shape, lambda i: (0, 0)),  # VMEM-resident W2
            ],
            out_specs=pl.BlockSpec((tile, out_cols), lambda i: (i, 0)),
        ),
        compiler_params=pltpu.CompilerParams(
            # Token axis is embarrassingly parallel -> megacore sharding on
            # v7x (needs >= 2 grid steps; see _choose_row_tile).
            dimension_semantics=("parallel",),
            # Ample even on v7x (64 MiB physical): at tm=2048 the packed x
            # tile is 2 MiB (x2 double-buffered), h f32 ~1 MiB, out ~0.25 MiB.
            vmem_limit_bytes=32 * 1024 * 1024,
        ),
    )(x2d, w1, w2)

    # Packed rows hold `pack` consecutive tokens' logits contiguously, so a
    # plain row-major reshape recovers [B, S, V] exactly.
    return out2d.reshape(B, S, V)


if __name__ == "__main__":
    # Shapes implied by the module: input_dim=32 -> hidden=16,
    # output_dim=4 (len(TAGS vocab)), batch=2, seq=8.
    B, S, D = 2, 8, 32
    H = D // 2
    V = 4

    key = jax.random.PRNGKey(0)
    kx, k1, k2 = jax.random.split(key, 3)

    x = jax.random.normal(kx, (B, S, D), dtype=jnp.float32)
    # Deterministic synthetic weights with nn.Linear layouts:
    # fc1.weight: (H, D), fc2.weight: (V, H), uniform(-1/sqrt(fan_in), +).
    w1 = jax.random.uniform(k1, (H, D), dtype=jnp.float32,
                            minval=-1.0 / jnp.sqrt(D), maxval=1.0 / jnp.sqrt(D))
    w2 = jax.random.uniform(k2, (V, H), dtype=jnp.float32,
                            minval=-1.0 / jnp.sqrt(H), maxval=1.0 / jnp.sqrt(H))

    # One-time prep (transpose + block-diagonal packing) at param-init time.
    params = prepare_params(w1, w2)

    def ref_forward(xx):
        return jnp.maximum(xx @ w1.T, 0.0) @ w2.T

    # --- small-shape path (packed, single grid step) ---
    out = binary_classifier_forward(x, params)
    out = jax.block_until_ready(out)
    assert out.shape == (B, S, V)
    assert jnp.allclose(out, ref_forward(x), atol=1e-5, rtol=1e-5)

    # --- tiled + ragged path (packed rows=45, tile=16 -> 3 grid steps,
    #     ragged last block; exercises VMEM-resident weights across steps) ---
    B2, S2 = 3, 120  # M = 360 -> 45 packed rows
    x_big = jax.random.normal(jax.random.PRNGKey(1), (B2, S2, D),
                              dtype=jnp.float32)
    out_big = binary_classifier_forward(x_big, params, tm=16)
    out_big = jax.block_until_ready(out_big)
    assert out_big.shape == (B2, S2, V)
    assert jnp.allclose(out_big, ref_forward(x_big), atol=1e-5, rtol=1e-5)

    # --- unpacked fallback (M % 8 != 0) ---
    B3, S3 = 1, 5
    x_odd = jax.random.normal(jax.random.PRNGKey(2), (B3, S3, D),
                              dtype=jnp.float32)
    out_odd = binary_classifier_forward(x_odd, params)
    out_odd = jax.block_until_ready(out_odd)
    assert out_odd.shape == (B3, S3, V)
    assert jnp.allclose(out_odd, ref_forward(x_odd), atol=1e-5, rtol=1e-5)

    # TODO(synk): get_ce_loss (cross-entropy with ignore_index/weight) is not
    # part of forward(); fusing it here would remove the logits HBM round trip
    # but changes the module's return contract, so it is left out.
    print("KERNEL_OK")
</pallas_src>

<mosaic_0001>
module attributes {stable_mosaic.version = 11 : i64} {
  func.func @_mlp_kernel(%arg0: i32, %arg1: memref<2x256xf32, #tpu.memory_space<vmem>>, %arg2: memref<256x128xf32, #tpu.memory_space<vmem>>, %arg3: memref<128x32xf32, #tpu.memory_space<vmem>>, %arg4: memref<2x32xf32, #tpu.memory_space<vmem>>) attributes {dimension_semantics = [#tpu.dimension_semantics<parallel>], iteration_bounds = array<i64: 1>, scalar_prefetch = 0 : i64, scratch_operands = 0 : i64, tpu.core_type = #tpu.core_type<tc>, window_params = [{transform_indices = @transform_0, window_bounds = array<i64: 2, 256>}, {pipeline_mode = #tpu.pipeline_mode<synchronous>, transform_indices = @transform_1, window_bounds = array<i64: 256, 128>}, {pipeline_mode = #tpu.pipeline_mode<synchronous>, transform_indices = @transform_2, window_bounds = array<i64: 128, 32>}, {transform_indices = @transform_3, window_bounds = array<i64: 2, 32>}]} {
    %c0 = arith.constant 0 : index
    %c0_0 = arith.constant 0 : index
    %0 = vector.load %arg1[%c0, %c0_0] : memref<2x256xf32, #tpu.memory_space<vmem>>, vector<2x256xf32>
    %c0_1 = arith.constant 0 : index
    %c0_2 = arith.constant 0 : index
    %1 = vector.load %arg2[%c0_1, %c0_2] : memref<256x128xf32, #tpu.memory_space<vmem>>, vector<256x128xf32>
    %cst = arith.constant dense<0.000000e+00> : vector<2x128xf32>
    %2 = tpu.matmul %0, %1, %cst {dimension_numbers = #tpu.dot_dimension_numbers<[1], [0], [0], [1], [0, 0, 1, 1], [], []>, precision = #tpu.contract_precision<fp32>} : vector<2x256xf32>, vector<256x128xf32>, vector<2x128xf32> -> vector<2x128xf32>
    %cst_3 = arith.constant 0.000000e+00 : f32
    %3 = vector.broadcast %cst_3 : f32 to vector<2x128xf32>
    %4 = arith.maximumf %2, %3 : vector<2x128xf32>
    %c0_4 = arith.constant 0 : index
    %c0_5 = arith.constant 0 : index
    %5 = vector.load %arg3[%c0_4, %c0_5] : memref<128x32xf32, #tpu.memory_space<vmem>>, vector<128x32xf32>
    %cst_6 = arith.constant dense<0.000000e+00> : vector<2x32xf32>
    %6 = tpu.matmul %4, %5, %cst_6 {dimension_numbers = #tpu.dot_dimension_numbers<[1], [0], [0], [1], [0, 0, 1, 1], [], []>, precision = #tpu.contract_precision<fp32>} : vector<2x128xf32>, vector<128x32xf32>, vector<2x32xf32> -> vector<2x32xf32>
    %c0_7 = arith.constant 0 : index
    %c0_8 = arith.constant 0 : index
    %7 = vector.load %arg4[%c0_7, %c0_8] : memref<2x32xf32, #tpu.memory_space<vmem>>, vector<2x32xf32>
    tpu.vector_store %arg4[%c0_7, %c0_8], %6 {strides = array<i32>} : memref<2x32xf32, #tpu.memory_space<vmem>>, vector<2x32xf32>,
    return
  }
  func.func @transform_0(%arg0: i32) -> (i32, i32) {
    %c0_i32 = arith.constant 0 : i32
    %c0_i32_0 = arith.constant 0 : i32
    return %arg0, %c0_i32 : i32, i32
  }
  func.func @transform_1(%arg0: i32) -> (i32, i32) {
    %c0_i32 = arith.constant 0 : i32
    %c0_i32_0 = arith.constant 0 : i32
    %c0_i32_1 = arith.constant 0 : i32
    return %c0_i32, %c0_i32_0 : i32, i32
  }
  func.func @transform_2(%arg0: i32) -> (i32, i32) {
    %c0_i32 = arith.constant 0 : i32
    %c0_i32_0 = arith.constant 0 : i32
    %c0_i32_1 = arith.constant 0 : i32
    return %c0_i32, %c0_i32_0 : i32, i32
  }
  func.func @transform_3(%arg0: i32) -> (i32, i32) {
    %c0_i32 = arith.constant 0 : i32
    %c0_i32_0 = arith.constant 0 : i32
    return %arg0, %c0_i32 : i32, i32
  }
}

</mosaic_0001>

<llo_original>
// kernel: tpu_custom_call.1
$region0: #{tpu_custom_call.1}
  #allocation0 [shape = 'u32[]', space=smem, size = 0x4, offset = 0x4, fixed_abs, tag = 'smem constant byte address 0x4 - core index']
  #allocation1 [shape = 'u32[144,128]{1,0:T(1,128)}', space=vmem, size = 0x12000, scoped, tag = 'internal scratch']
  %s0 = inlined_call_operand.vmem [shape: f32[2,256], index: 0, kind: input, shape index: {}]
  %s1 = inlined_call_operand.hbm [shape: f32[256,128], index: 1, kind: input, shape index: {}]
  %s2 = inlined_call_operand.vmem [shape: f32[128,32], index: 2, kind: input, shape index: {}]
  %s3 = inlined_call_operand.hbm [shape: f32[2,32], index: 3, kind: output, shape index: {}]
  %s4 = sld [smem:[#allocation0]]
  $region26: #{tpu_custom_call.1} parent=0
    _
  %s6 = ssub.s32 1, %s4
  %s7 = scalar_select 0, %s6, %s4
  $region1: #{tpu_custom_call.1} parent=0
    #allocation2 [shape = 'u8[131072]{0}', space=vmem, size = 0x20000, scoped, tag = 'input window, operand 1, single buffered']
    #allocation3 [shape = 's32[1]{0}', space=sflag, size = 0x4, scoped, tag = 'scoped memory for tpu_custom_call.1']
    #allocation4 [shape = 's32[1]{0}', space=sflag, size = 0x4, scoped, tag = 'scoped memory for tpu_custom_call.1']
    #allocation5 [shape = 'u8[1024]{0}', space=vmem, size = 0x400, scoped, tag = 'output window, operand 0, single buffered']
    %8 = vsyncpa [#allocation3], 0
    %9 = vsyncpa [#allocation4], 0
    // Predicated region
    $region2: #{tpu_custom_call.1} parent=1 // pred_check
      _
    $region3: #{tpu_custom_call.1} parent=1 // pred_check_branch
      %11 = sbr.rel (0) target = $region5
    $region4: #{tpu_custom_call.1} parent=1 // pred_region
      _
    $region5: #{tpu_custom_call.1} parent=1 // pred_fallthru
      _
    // Predicated region
    $region6: #{tpu_custom_call.1} parent=1 // pred_check
      _
    $region7: #{tpu_custom_call.1} parent=1 // pred_check_branch
      %13 = sbr.rel (0) target = $region9
    $region8: #{tpu_custom_call.1} parent=1 // pred_region
      %s15 = ssub.s32 4096, 4096
      %16 = vsyncadd [#allocation3], %s15
      %s17 = sshll.u32 [#allocation2], 4
      %s18 = int_to_ptr.vmem [resolvable:$true] %s17
      %23 = dma.hbm_to_vmem [thread:$0]  %s1, 4096, %s18, [#allocation3], 128, 128, 8
    $region9: #{tpu_custom_call.1} parent=1 // pred_fallthru
      _
    // Predicated region
    $region10: #{tpu_custom_call.1} parent=1 // pred_check
      _
    $region11: #{tpu_custom_call.1} parent=1 // pred_check_branch
      %25 = sbr.rel (0) target = $region13
    $region12: #{tpu_custom_call.1} parent=1 // pred_region
      _
    $region13: #{tpu_custom_call.1} parent=1 // pred_fallthru
      _
    // Predicated region
    $region14: #{tpu_custom_call.1} parent=1 // pred_check
      _
    $region15: #{tpu_custom_call.1} parent=1 // pred_check_branch
      %27 = sbr.rel (0) target = $region17
    $region16: #{tpu_custom_call.1} parent=1 // pred_region
      %28 = dma.done [#allocation3], 4096
    $region17: #{tpu_custom_call.1} parent=1 // pred_fallthru
      _
    %v29 = vld [vmem:[%s0] sm:$0xf]
    %v30 = vld [vmem:[#allocation2] sm:$0xff]
    %v31 = vld [vmem:[#allocation2 + $0x8] sm:$0xff]
    %v32 = vld [vmem:[#allocation2 + $0x10] sm:$0xff]
    %v33 = vld [vmem:[#allocation2 + $0x18] sm:$0xff]
    %v34 = vld [vmem:[#allocation2 + $0x20] sm:$0xff]
    %v35 = vld [vmem:[#allocation2 + $0x28] sm:$0xff]
    %v36 = vld [vmem:[#allocation2 + $0x30] sm:$0xff]
    %v37 = vld [vmem:[#allocation2 + $0x38] sm:$0xff]
    %v38 = vld [vmem:[#allocation2 + $0x40] sm:$0xff]
    %v39 = vld [vmem:[#allocation2 + $0x48] sm:$0xff]
    %v40 = vld [vmem:[#allocation2 + $0x50] sm:$0xff]
    %v41 = vld [vmem:[#allocation2 + $0x58] sm:$0xff]
    %v42 = vld [vmem:[#allocation2 + $0x60] sm:$0xff]
    %v43 = vld [vmem:[#allocation2 + $0x68] sm:$0xff]
    %v44 = vld [vmem:[#allocation2 + $0x70] sm:$0xff]
    %v45 = vld [vmem:[#allocation2 + $0x78] sm:$0xff]
    %v46 = vld [vmem:[#allocation2 + $0x80] sm:$0xff]
    %v47 = vld [vmem:[#allocation2 + $0x88] sm:$0xff]
    %v48 = vld [vmem:[#allocation2 + $0x90] sm:$0xff]
    %v49 = vld [vmem:[#allocation2 + $0x98] sm:$0xff]
    %v50 = vld [vmem:[#allocation2 + $0xa0] sm:$0xff]
    %v51 = vld [vmem:[#allocation2 + $0xa8] sm:$0xff]
    %v52 = vld [vmem:[#allocation2 + $0xb0] sm:$0xff]
    %v53 = vld [vmem:[#allocation2 + $0xb8] sm:$0xff]
    %v54 = vld [vmem:[#allocation2 + $0xc0] sm:$0xff]
    %v55 = vld [vmem:[#allocation2 + $0xc8] sm:$0xff]
    %v56 = vld [vmem:[#allocation2 + $0xd0] sm:$0xff]
    %v57 = vld [vmem:[#allocation2 + $0xd8] sm:$0xff]
    %v58 = vld [vmem:[#allocation2 + $0xe0] sm:$0xff]
    %v59 = vld [vmem:[#allocation2 + $0xe8] sm:$0xff]
    %v60 = vld [vmem:[#allocation2 + $0xf0] sm:$0xff]
    %v61 = vld [vmem:[#allocation2 + $0xf8] sm:$0xff]
    %v64 = vunpack.c.l.s4 1983009808
    %v65 = vunpack.c.0.s8 %v64
    %v66 = vlaneseq
    %v67 = vshrl.u32 %v66, 7
    %v68 = vsub.s32 %v65, %v67
    %v69 = vrot.slane %v29, %v68
    %v70 = vcombine.high %v69, %v69
    %73 = vmatprep.subr.mxu0 0.0
    %v74 = vand.u32 %v30, 4294901760
    %75 = vmatpush1.msra.mxu0 %v74
    %76 = vmatprep.subr.mxu0 0.0
    %v77 = vand.u32 %v31, 4294901760
    %78 = vmatpush1.msra.mxu0 %v77
    %79 = vmatprep.subr.mxu0 0.0
    %v80 = vand.u32 %v32, 4294901760
    %81 = vmatpush1.msra.mxu0 %v80
    %82 = vmatprep.subr.mxu0 0.0
    %v83 = vand.u32 %v33, 4294901760
    %84 = vmatpush1.msra.mxu0 %v83
    %85 = vmatprep.subr.mxu0 0.0
    %v86 = vand.u32 %v34, 4294901760
    %87 = vmatpush1.msra.mxu0 %v86
    %88 = vmatprep.subr.mxu0 0.0
    %v89 = vand.u32 %v35, 4294901760
    %90 = vmatpush1.msra.mxu0 %v89
    %91 = vmatprep.subr.mxu0 0.0
    %v92 = vand.u32 %v36, 4294901760
    %93 = vmatpush1.msra.mxu0 %v92
    %94 = vmatprep.subr.mxu0 0.0
    %v95 = vand.u32 %v37, 4294901760
    %96 = vmatpush1.msra.mxu0 %v95
    %97 = vmatprep.subr.mxu0 0.0
    %v98 = vand.u32 %v38, 4294901760
    %99 = vmatpush1.msra.mxu0 %v98
    %100 = vmatprep.subr.mxu0 0.0
    %v101 = vand.u32 %v39, 4294901760
    %102 = vmatpush1.msra.mxu0 %v101
    %103 = vmatprep.subr.mxu0 0.0
    %v104 = vand.u32 %v40, 4294901760
    %105 = vmatpush1.msra.mxu0 %v104
    %106 = vmatprep.subr.mxu0 0.0
    %v107 = vand.u32 %v41, 4294901760
    %108 = vmatpush1.msra.mxu0 %v107
    %109 = vmatprep.subr.mxu0 0.0
    %v110 = vand.u32 %v42, 4294901760
    %111 = vmatpush1.msra.mxu0 %v110
    %112 = vmatprep.subr.mxu0 0.0
    %v113 = vand.u32 %v43, 4294901760
    %114 = vmatpush1.msra.mxu0 %v113
    %115 = vmatprep.subr.mxu0 0.0
    %v116 = vand.u32 %v44, 4294901760
    %117 = vmatpush1.msra.mxu0 %v116
    %118 = vmatprep.subr.mxu0 0.0
    %v119 = vand.u32 %v45, 4294901760
    %120 = vmatpush1.msra.mxu0 %v119
    %121 = vmatprep.subr.mxu0 0.0
    %v122 = vand.u32 %v46, 4294901760
    %123 = vmatpush1.msra.mxu0 %v122
    %124 = vmatprep.subr.mxu0 0.0
    %v125 = vand.u32 %v47, 4294901760
    %126 = vmatpush1.msra.mxu0 %v125
    %127 = vmatprep.subr.mxu0 0.0
    %v128 = vand.u32 %v48, 4294901760
    %129 = vmatpush1.msra.mxu0 %v128
    %130 = vmatprep.subr.mxu0 0.0
    %v131 = vand.u32 %v49, 4294901760
    %132 = vmatpush1.msra.mxu0 %v131
    %133 = vmatprep.subr.mxu0 0.0
    %v134 = vand.u32 %v50, 4294901760
    %135 = vmatpush1.msra.mxu0 %v134
    %136 = vmatprep.subr.mxu0 0.0
    %v137 = vand.u32 %v51, 4294901760
    %138 = vmatpush1.msra.mxu0 %v137
    %139 = vmatprep.subr.mxu0 0.0
    %v140 = vand.u32 %v52, 4294901760
    %141 = vmatpush1.msra.mxu0 %v140
    %142 = vmatprep.subr.mxu0 0.0
    %v143 = vand.u32 %v53, 4294901760
    %144 = vmatpush1.msra.mxu0 %v143
    %145 = vmatprep.subr.mxu0 0.0
    %v146 = vand.u32 %v54, 4294901760
    %147 = vmatpush1.msra.mxu0 %v146
    %148 = vmatprep.subr.mxu0 0.0
    %v149 = vand.u32 %v55, 4294901760
    %150 = vmatpush1.msra.mxu0 %v149
    %151 = vmatprep.subr.mxu0 0.0
    %v152 = vand.u32 %v56, 4294901760
    %153 = vmatpush1.msra.mxu0 %v152
    %154 = vmatprep.subr.mxu0 0.0
    %v155 = vand.u32 %v57, 4294901760
    %156 = vmatpush1.msra.mxu0 %v155
    %157 = vmatprep.subr.mxu0 0.0
    %v158 = vand.u32 %v58, 4294901760
    %159 = vmatpush1.msra.mxu0 %v158
    %160 = vmatprep.subr.mxu0 0.0
    %v161 = vand.u32 %v59, 4294901760
    %162 = vmatpush1.msra.mxu0 %v161
    %163 = vmatprep.subr.mxu0 0.0
    %v164 = vand.u32 %v60, 4294901760
    %165 = vmatpush1.msra.mxu0 %v164
    %166 = vmatprep.subr.mxu0 0.0
    %v167 = vand.u32 %v61, 4294901760
    %168 = vmatpush1.msra.mxu0 %v167
    %v169 = vand.u32 %v70, 4294901760
    %v170 = vsub.f32 %v70, %v169
    %v171 = vand.u32 %v170, 4294901760
    %v172 = vsub.f32 %v170, %v171
    %v173 = vand.u32 %v172, 4294901760
    %174 = vmatprep.mubr.f32.mxu0 %v173
    %v175 = vand.u32 %v69, 4294901760
    %v176 = vsub.f32 %v69, %v175
    %v177 = vand.u32 %v176, 4294901760
    %v178 = vsub.f32 %v176, %v177
    %v179 = vand.u32 %v178, 4294901760
    %180 = vmatmul.mubr.f32.gmra.mrb[0].mxu0 %v179
    %v181 = vpop.f32.mrb[0].mxu0
    %v182 = vadd.f32 0.0, %v181
    %v183 = vpop.f32.mrb[0].mxu0
    %184 = vdwg.mxu0
    %185 = vmatprep.subr.mxu0 0.0
    %v186 = vand.u32 %v30, 4294901760
    %v187 = vsub.f32 %v30, %v186
    %v188 = vand.u32 %v187, 4294901760
    %v189 = vsub.f32 %v187, %v188
    %v190 = vand.u32 %v189, 4294901760
    %191 = vmatpush1.msra.mxu0 %v190
    %192 = vmatprep.subr.mxu0 0.0
    %v193 = vand.u32 %v31, 4294901760
    %v194 = vsub.f32 %v31, %v193
    %v195 = vand.u32 %v194, 4294901760
    %v196 = vsub.f32 %v194, %v195
    %v197 = vand.u32 %v196, 4294901760
    %198 = vmatpush1.msra.mxu0 %v197
    %199 = vmatprep.subr.mxu0 0.0
    %v200 = vand.u32 %v32, 4294901760
    %v201 = vsub.f32 %v32, %v200
    %v202 = vand.u32 %v201, 4294901760
    %v203 = vsub.f32 %v201, %v202
    %v204 = vand.u32 %v203, 4294901760
    %205 = vmatpush1.msra.mxu0 %v204
    %206 = vmatprep.subr.mxu0 0.0
    %v207 = vand.u32 %v33, 4294901760
    %v208 = vsub.f32 %v33, %v207
    %v209 = vand.u32 %v208, 4294901760
    %v210 = vsub.f32 %v208, %v209
    %v211 = vand.u32 %v210, 4294901760
    %212 = vmatpush1.msra.mxu0 %v211
    %213 = vmatprep.subr.mxu0 0.0
    %v214 = vand.u32 %v34, 4294901760
    %v215 = vsub.f32 %v34, %v214
    %v216 = vand.u32 %v215, 4294901760
    %v217 = vsub.f32 %v215, %v216
    %v218 = vand.u32 %v217, 4294901760
    %219 = vmatpush1.msra.mxu0 %v218
    %220 = vmatprep.subr.mxu0 0.0
    %v221 = vand.u32 %v35, 4294901760
    %v222 = vsub.f32 %v35, %v221
    %v223 = vand.u32 %v222, 4294901760
    %v224 = vsub.f32 %v222, %v223
    %v225 = vand.u32 %v224, 4294901760
    %226 = vmatpush1.msra.mxu0 %v225
    %227 = vmatprep.subr.mxu0 0.0
    %v228 = vand.u32 %v36, 4294901760
    %v229 = vsub.f32 %v36, %v228
    %v230 = vand.u32 %v229, 4294901760
    %v231 = vsub.f32 %v229, %v230
    %v232 = vand.u32 %v231, 4294901760
    %233 = vmatpush1.msra.mxu0 %v232
    %234 = vmatprep.subr.mxu0 0.0
    %v235 = vand.u32 %v37, 4294901760
    %v236 = vsub.f32 %v37, %v235
    %v237 = vand.u32 %v236, 4294901760
    %v238 = vsub.f32 %v236, %v237
    %v239 = vand.u32 %v238, 4294901760
    %240 = vmatpush1.msra.mxu0 %v239
    %241 = vmatprep.subr.mxu0 0.0
    %v242 = vand.u32 %v38, 4294901760
    %v243 = vsub.f32 %v38, %v242
    %v244 = vand.u32 %v243, 4294901760
    %v245 = vsub.f32 %v243, %v244
    %v246 = vand.u32 %v245, 4294901760
    %247 = vmatpush1.msra.mxu0 %v246
    %248 = vmatprep.subr.mxu0 0.0
    %v249 = vand.u32 %v39, 4294901760
    %v250 = vsub.f32 %v39, %v249
    %v251 = vand.u32 %v250, 4294901760
    %v252 = vsub.f32 %v250, %v251
    %v253 = vand.u32 %v252, 4294901760
    %254 = vmatpush1.msra.mxu0 %v253
    %255 = vmatprep.subr.mxu0 0.0
    %v256 = vand.u32 %v40, 4294901760
    %v257 = vsub.f32 %v40, %v256
    %v258 = vand.u32 %v257, 4294901760
    %v259 = vsub.f32 %v257, %v258
    %v260 = vand.u32 %v259, 4294901760
    %261 = vmatpush1.msra.mxu0 %v260
    %262 = vmatprep.subr.mxu0 0.0
    %v263 = vand.u32 %v41, 4294901760
    %v264 = vsub.f32 %v41, %v263
    %v265 = vand.u32 %v264, 4294901760
    %v266 = vsub.f32 %v264, %v265
    %v267 = vand.u32 %v266, 4294901760
    %268 = vmatpush1.msra.mxu0 %v267
    %269 = vmatprep.subr.mxu0 0.0
    %v270 = vand.u32 %v42, 4294901760
    %v271 = vsub.f32 %v42, %v270
    %v272 = vand.u32 %v271, 4294901760
    %v273 = vsub.f32 %v271, %v272
    %v274 = vand.u32 %v273, 4294901760
    %275 = vmatpush1.msra.mxu0 %v274
    %276 = vmatprep.subr.mxu0 0.0
    %v277 = vand.u32 %v43, 4294901760
    %v278 = vsub.f32 %v43, %v277
    %v279 = vand.u32 %v278, 4294901760
    %v280 = vsub.f32 %v278, %v279
    %v281 = vand.u32 %v280, 4294901760
    %282 = vmatpush1.msra.mxu0 %v281
    %283 = vmatprep.subr.mxu0 0.0
    %v284 = vand.u32 %v44, 4294901760
    %v285 = vsub.f32 %v44, %v284
    %v286 = vand.u32 %v285, 4294901760
    %v287 = vsub.f32 %v285, %v286
    %v288 = vand.u32 %v287, 4294901760
    %289 = vmatpush1.msra.mxu0 %v288
    %290 = vmatprep.subr.mxu0 0.0
    %v291 = vand.u32 %v45, 4294901760
    %v292 = vsub.f32 %v45, %v291
    %v293 = vand.u32 %v292, 4294901760
    %v294 = vsub.f32 %v292, %v293
    %v295 = vand.u32 %v294, 4294901760
    %296 = vmatpush1.msra.mxu0 %v295
    %297 = vmatprep.subr.mxu0 0.0
    %v298 = vand.u32 %v46, 4294901760
    %v299 = vsub.f32 %v46, %v298
    %v300 = vand.u32 %v299, 4294901760
    %v301 = vsub.f32 %v299, %v300
    %v302 = vand.u32 %v301, 4294901760
    %303 = vmatpush1.msra.mxu0 %v302
    %304 = vmatprep.subr.mxu0 0.0
    %v305 = vand.u32 %v47, 4294901760
    %v306 = vsub.f32 %v47, %v305
    %v307 = vand.u32 %v306, 4294901760
    %v308 = vsub.f32 %v306, %v307
    %v309 = vand.u32 %v308, 4294901760
    %310 = vmatpush1.msra.mxu0 %v309
    %311 = vmatprep.subr.mxu0 0.0
    %v312 = vand.u32 %v48, 4294901760
    %v313 = vsub.f32 %v48, %v312
    %v314 = vand.u32 %v313, 4294901760
    %v315 = vsub.f32 %v313, %v314
    %v316 = vand.u32 %v315, 4294901760
    %317 = vmatpush1.msra.mxu0 %v316
    %318 = vmatprep.subr.mxu0 0.0
    %v319 = vand.u32 %v49, 4294901760
    %v320 = vsub.f32 %v49, %v319
    %v321 = vand.u32 %v320, 4294901760
    %v322 = vsub.f32 %v320, %v321
    %v323 = vand.u32 %v322, 4294901760
    %324 = vmatpush1.msra.mxu0 %v323
    %325 = vmatprep.subr.mxu0 0.0
    %v326 = vand.u32 %v50, 4294901760
    %v327 = vsub.f32 %v50, %v326
    %v328 = vand.u32 %v327, 4294901760
    %v329 = vsub.f32 %v327, %v328
    %v330 = vand.u32 %v329, 4294901760
    %331 = vmatpush1.msra.mxu0 %v330
    %332 = vmatprep.subr.mxu0 0.0
    %v333 = vand.u32 %v51, 4294901760
    %v334 = vsub.f32 %v51, %v333
    %v335 = vand.u32 %v334, 4294901760
    %v336 = vsub.f32 %v334, %v335
    %v337 = vand.u32 %v336, 4294901760
    %338 = vmatpush1.msra.mxu0 %v337
    %339 = vmatprep.subr.mxu0 0.0
    %v340 = vand.u32 %v52, 4294901760
    %v341 = vsub.f32 %v52, %v340
    %v342 = vand.u32 %v341, 4294901760
    %v343 = vsub.f32 %v341, %v342
    %v344 = vand.u32 %v343, 4294901760
    %345 = vmatpush1.msra.mxu0 %v344
    %346 = vmatprep.subr.mxu0 0.0
    %v347 = vand.u32 %v53, 4294901760
    %v348 = vsub.f32 %v53, %v347
    %v349 = vand.u32 %v348, 4294901760
    %v350 = vsub.f32 %v348, %v349
    %v351 = vand.u32 %v350, 4294901760
    %352 = vmatpush1.msra.mxu0 %v351
    %353 = vmatprep.subr.mxu0 0.0
    %v354 = vand.u32 %v54, 4294901760
    %v355 = vsub.f32 %v54, %v354
    %v356 = vand.u32 %v355, 4294901760
    %v357 = vsub.f32 %v355, %v356
    %v358 = vand.u32 %v357, 4294901760
    %359 = vmatpush1.msra.mxu0 %v358
    %360 = vmatprep.subr.mxu0 0.0
    %v361 = vand.u32 %v55, 4294901760
    %v362 = vsub.f32 %v55, %v361
    %v363 = vand.u32 %v362, 4294901760
    %v364 = vsub.f32 %v362, %v363
    %v365 = vand.u32 %v364, 4294901760
    %366 = vmatpush1.msra.mxu0 %v365
    %367 = vmatprep.subr.mxu0 0.0
    %v368 = vand.u32 %v56, 4294901760
    %v369 = vsub.f32 %v56, %v368
    %v370 = vand.u32 %v369, 4294901760
    %v371 = vsub.f32 %v369, %v370
    %v372 = vand.u32 %v371, 4294901760
    %373 = vmatpush1.msra.mxu0 %v372
    %374 = vmatprep.subr.mxu0 0.0
    %v375 = vand.u32 %v57, 4294901760
    %v376 = vsub.f32 %v57, %v375
    %v377 = vand.u32 %v376, 4294901760
    %v378 = vsub.f32 %v376, %v377
    %v379 = vand.u32 %v378, 4294901760
    %380 = vmatpush1.msra.mxu0 %v379
    %381 = vmatprep.subr.mxu0 0.0
    %v382 = vand.u32 %v58, 4294901760
    %v383 = vsub.f32 %v58, %v382
    %v384 = vand.u32 %v383, 4294901760
    %v385 = vsub.f32 %v383, %v384
    %v386 = vand.u32 %v385, 4294901760
    %387 = vmatpush1.msra.mxu0 %v386
    %388 = vmatprep.subr.mxu0 0.0
    %v389 = vand.u32 %v59, 4294901760
    %v390 = vsub.f32 %v59, %v389
    %v391 = vand.u32 %v390, 4294901760
    %v392 = vsub.f32 %v390, %v391
    %v393 = vand.u32 %v392, 4294901760
    %394 = vmatpush1.msra.mxu0 %v393
    %395 = vmatprep.subr.mxu0 0.0
    %v396 = vand.u32 %v60, 4294901760
    %v397 = vsub.f32 %v60, %v396
    %v398 = vand.u32 %v397, 4294901760
    %v399 = vsub.f32 %v397, %v398
    %v400 = vand.u32 %v399, 4294901760
    %401 = vmatpush1.msra.mxu0 %v400
    %402 = vmatprep.subr.mxu0 0.0
    %v403 = vand.u32 %v61, 4294901760
    %v404 = vsub.f32 %v61, %v403
    %v405 = vand.u32 %v404, 4294901760
    %v406 = vsub.f32 %v404, %v405
    %v407 = vand.u32 %v406, 4294901760
    %408 = vmatpush1.msra.mxu0 %v407
    %v409 = vand.u32 %v70, 4294901760
    %410 = vmatprep.mubr.f32.mxu0 %v409
    %v411 = vand.u32 %v69, 4294901760
    %412 = vmatmul.mubr.f32.gmra.mrb[0].mxu0 %v411
    %v413 = vpop.f32.mrb[0].mxu0
    %v414 = vadd.f32 %v182, %v413
    %v415 = vpop.f32.mrb[0].mxu0
    %416 = vdwg.mxu0
    %417 = vmatprep.subr.mxu0 0.0
    %v418 = vand.u32 %v30, 4294901760
    %v419 = vsub.f32 %v30, %v418
    %420 = vmatpush1.msra.mxu0 %v419
    %421 = vmatprep.subr.mxu0 0.0
    %v422 = vand.u32 %v31, 4294901760
    %v423 = vsub.f32 %v31, %v422
    %424 = vmatpush1.msra.mxu0 %v423
    %425 = vmatprep.subr.mxu0 0.0
    %v426 = vand.u32 %v32, 4294901760
    %v427 = vsub.f32 %v32, %v426
    %428 = vmatpush1.msra.mxu0 %v427
    %429 = vmatprep.subr.mxu0 0.0
    %v430 = vand.u32 %v33, 4294901760
    %v431 = vsub.f32 %v33, %v430
    %432 = vmatpush1.msra.mxu0 %v431
    %433 = vmatprep.subr.mxu0 0.0
    %v434 = vand.u32 %v34, 4294901760
    %v435 = vsub.f32 %v34, %v434
    %436 = vmatpush1.msra.mxu0 %v435
    %437 = vmatprep.subr.mxu0 0.0
    %v438 = vand.u32 %v35, 4294901760
    %v439 = vsub.f32 %v35, %v438
    %440 = vmatpush1.msra.mxu0 %v439
    %441 = vmatprep.subr.mxu0 0.0
    %v442 = vand.u32 %v36, 4294901760
    %v443 = vsub.f32 %v36, %v442
    %444 = vmatpush1.msra.mxu0 %v443
    %445 = vmatprep.subr.mxu0 0.0
    %v446 = vand.u32 %v37, 4294901760
    %v447 = vsub.f32 %v37, %v446
    %448 = vmatpush1.msra.mxu0 %v447
    %449 = vmatprep.subr.mxu0 0.0
    %v450 = vand.u32 %v38, 4294901760
    %v451 = vsub.f32 %v38, %v450
    %452 = vmatpush1.msra.mxu0 %v451
    %453 = vmatprep.subr.mxu0 0.0
    %v454 = vand.u32 %v39, 4294901760
    %v455 = vsub.f32 %v39, %v454
    %456 = vmatpush1.msra.mxu0 %v455
    %457 = vmatprep.subr.mxu0 0.0
    %v458 = vand.u32 %v40, 4294901760
    %v459 = vsub.f32 %v40, %v458
    %460 = vmatpush1.msra.mxu0 %v459
    %461 = vmatprep.subr.mxu0 0.0
    %v462 = vand.u32 %v41, 4294901760
    %v463 = vsub.f32 %v41, %v462
    %464 = vmatpush1.msra.mxu0 %v463
    %465 = vmatprep.subr.mxu0 0.0
    %v466 = vand.u32 %v42, 4294901760
    %v467 = vsub.f32 %v42, %v466
    %468 = vmatpush1.msra.mxu0 %v467
    %469 = vmatprep.subr.mxu0 0.0
    %v470 = vand.u32 %v43, 4294901760
    %v471 = vsub.f32 %v43, %v470
    %472 = vmatpush1.msra.mxu0 %v471
    %473 = vmatprep.subr.mxu0 0.0
    %v474 = vand.u32 %v44, 4294901760
    %v475 = vsub.f32 %v44, %v474
    %476 = vmatpush1.msra.mxu0 %v475
    %477 = vmatprep.subr.mxu0 0.0
    %v478 = vand.u32 %v45, 4294901760
    %v479 = vsub.f32 %v45, %v478
    %480 = vmatpush1.msra.mxu0 %v479
    %481 = vmatprep.subr.mxu0 0.0
    %v482 = vand.u32 %v46, 4294901760
    %v483 = vsub.f32 %v46, %v482
    %484 = vmatpush1.msra.mxu0 %v483
    %485 = vmatprep.subr.mxu0 0.0
    %v486 = vand.u32 %v47, 4294901760
    %v487 = vsub.f32 %v47, %v486
    %488 = vmatpush1.msra.mxu0 %v487
    %489 = vmatprep.subr.mxu0 0.0
    %v490 = vand.u32 %v48, 4294901760
    %v491 = vsub.f32 %v48, %v490
    %492 = vmatpush1.msra.mxu0 %v491
    %493 = vmatprep.subr.mxu0 0.0
    %v494 = vand.u32 %v49, 4294901760
    %v495 = vsub.f32 %v49, %v494
    %496 = vmatpush1.msra.mxu0 %v495
    %497 = vmatprep.subr.mxu0 0.0
    %v498 = vand.u32 %v50, 4294901760
    %v499 = vsub.f32 %v50, %v498
    %500 = vmatpush1.msra.mxu0 %v499
    %501 = vmatprep.subr.mxu0 0.0
    %v502 = vand.u32 %v51, 4294901760
    %v503 = vsub.f32 %v51, %v502
    %504 = vmatpush1.msra.mxu0 %v503
    %505 = vmatprep.subr.mxu0 0.0
    %v506 = vand.u32 %v52, 4294901760
    %v507 = vsub.f32 %v52, %v506
    %508 = vmatpush1.msra.mxu0 %v507
    %509 = vmatprep.subr.mxu0 0.0
    %v510 = vand.u32 %v53, 4294901760
    %v511 = vsub.f32 %v53, %v510
    %512 = vmatpush1.msra.mxu0 %v511
    %513 = vmatprep.subr.mxu0 0.0
    %v514 = vand.u32 %v54, 4294901760
    %v515 = vsub.f32 %v54, %v514
    %516 = vmatpush1.msra.mxu0 %v515
    %517 = vmatprep.subr.mxu0 0.0
    %v518 = vand.u32 %v55, 4294901760
    %v519 = vsub.f32 %v55, %v518
    %520 = vmatpush1.msra.mxu0 %v519
    %521 = vmatprep.subr.mxu0 0.0
    %v522 = vand.u32 %v56, 4294901760
    %v523 = vsub.f32 %v56, %v522
    %524 = vmatpush1.msra.mxu0 %v523
    %525 = vmatprep.subr.mxu0 0.0
    %v526 = vand.u32 %v57, 4294901760
    %v527 = vsub.f32 %v57, %v526
    %528 = vmatpush1.msra.mxu0 %v527
    %529 = vmatprep.subr.mxu0 0.0
    %v530 = vand.u32 %v58, 4294901760
    %v531 = vsub.f32 %v58, %v530
    %532 = vmatpush1.msra.mxu0 %v531
    %533 = vmatprep.subr.mxu0 0.0
    %v534 = vand.u32 %v59, 4294901760
    %v535 = vsub.f32 %v59, %v534
    %536 = vmatpush1.msra.mxu0 %v535
    %537 = vmatprep.subr.mxu0 0.0
    %v538 = vand.u32 %v60, 4294901760
    %v539 = vsub.f32 %v60, %v538
    %540 = vmatpush1.msra.mxu0 %v539
    %541 = vmatprep.subr.mxu0 0.0
    %v542 = vand.u32 %v61, 4294901760
    %v543 = vsub.f32 %v61, %v542
    %544 = vmatpush1.msra.mxu0 %v543
    %v545 = vand.u32 %v70, 4294901760
    %v546 = vsub.f32 %v70, %v545
    %547 = vmatprep.mubr.f32.mxu0 %v546
    %v548 = vand.u32 %v69, 4294901760
    %v549 = vsub.f32 %v69, %v548
    %550 = vmatmul.mubr.f32.gmra.mrb[0].mxu0 %v549
    %v551 = vpop.f32.mrb[0].mxu0
    %v552 = vadd.f32 %v414, %v551
    %v553 = vpop.f32.mrb[0].mxu0
    %554 = vdwg.mxu0
    %555 = vmatprep.subr.mxu0 0.0
    %v556 = vand.u32 %v30, 4294901760
    %557 = vmatpush1.msra.mxu0 %v556
    %558 = vmatprep.subr.mxu0 0.0
    %v559 = vand.u32 %v31, 4294901760
    %560 = vmatpush1.msra.mxu0 %v559
    %561 = vmatprep.subr.mxu0 0.0
    %v562 = vand.u32 %v32, 4294901760
    %563 = vmatpush1.msra.mxu0 %v562
    %564 = vmatprep.subr.mxu0 0.0
    %v565 = vand.u32 %v33, 4294901760
    %566 = vmatpush1.msra.mxu0 %v565
    %567 = vmatprep.subr.mxu0 0.0
    %v568 = vand.u32 %v34, 4294901760
    %569 = vmatpush1.msra.mxu0 %v568
    %570 = vmatprep.subr.mxu0 0.0
    %v571 = vand.u32 %v35, 4294901760
    %572 = vmatpush1.msra.mxu0 %v571
    %573 = vmatprep.subr.mxu0 0.0
    %v574 = vand.u32 %v36, 4294901760
    %575 = vmatpush1.msra.mxu0 %v574
    %576 = vmatprep.subr.mxu0 0.0
    %v577 = vand.u32 %v37, 4294901760
    %578 = vmatpush1.msra.mxu0 %v577
    %579 = vmatprep.subr.mxu0 0.0
    %v580 = vand.u32 %v38, 4294901760
    %581 = vmatpush1.msra.mxu0 %v580
    %582 = vmatprep.subr.mxu0 0.0
    %v583 = vand.u32 %v39, 4294901760
    %584 = vmatpush1.msra.mxu0 %v583
    %585 = vmatprep.subr.mxu0 0.0
    %v586 = vand.u32 %v40, 4294901760
    %587 = vmatpush1.msra.mxu0 %v586
    %588 = vmatprep.subr.mxu0 0.0
    %v589 = vand.u32 %v41, 4294901760
    %590 = vmatpush1.msra.mxu0 %v589
    %591 = vmatprep.subr.mxu0 0.0
    %v592 = vand.u32 %v42, 4294901760
    %593 = vmatpush1.msra.mxu0 %v592
    %594 = vmatprep.subr.mxu0 0.0
    %v595 = vand.u32 %v43, 4294901760
    %596 = vmatpush1.msra.mxu0 %v595
    %597 = vmatprep.subr.mxu0 0.0
    %v598 = vand.u32 %v44, 4294901760
    %599 = vmatpush1.msra.mxu0 %v598
    %600 = vmatprep.subr.mxu0 0.0
    %v601 = vand.u32 %v45, 4294901760
    %602 = vmatpush1.msra.mxu0 %v601
    %603 = vmatprep.subr.mxu0 0.0
    %v604 = vand.u32 %v46, 4294901760
    %605 = vmatpush1.msra.mxu0 %v604
    %606 = vmatprep.subr.mxu0 0.0
    %v607 = vand.u32 %v47, 4294901760
    %608 = vmatpush1.msra.mxu0 %v607
    %609 = vmatprep.subr.mxu0 0.0
    %v610 = vand.u32 %v48, 4294901760
    %611 = vmatpush1.msra.mxu0 %v610
    %612 = vmatprep.subr.mxu0 0.0
    %v613 = vand.u32 %v49, 4294901760
    %614 = vmatpush1.msra.mxu0 %v613
    %615 = vmatprep.subr.mxu0 0.0
    %v616 = vand.u32 %v50, 4294901760
    %617 = vmatpush1.msra.mxu0 %v616
    %618 = vmatprep.subr.mxu0 0.0
    %v619 = vand.u32 %v51, 4294901760
    %620 = vmatpush1.msra.mxu0 %v619
    %621 = vmatprep.subr.mxu0 0.0
    %v622 = vand.u32 %v52, 4294901760
    %623 = vmatpush1.msra.mxu0 %v622
    %624 = vmatprep.subr.mxu0 0.0
    %v625 = vand.u32 %v53, 4294901760
    %626 = vmatpush1.msra.mxu0 %v625
    %627 = vmatprep.subr.mxu0 0.0
    %v628 = vand.u32 %v54, 4294901760
    %629 = vmatpush1.msra.mxu0 %v628
    %630 = vmatprep.subr.mxu0 0.0
    %v631 = vand.u32 %v55, 4294901760
    %632 = vmatpush1.msra.mxu0 %v631
    %633 = vmatprep.subr.mxu0 0.0
    %v634 = vand.u32 %v56, 4294901760
    %635 = vmatpush1.msra.mxu0 %v634
    %636 = vmatprep.subr.mxu0 0.0
    %v637 = vand.u32 %v57, 4294901760
    %638 = vmatpush1.msra.mxu0 %v637
    %639 = vmatprep.subr.mxu0 0.0
    %v640 = vand.u32 %v58, 4294901760
    %641 = vmatpush1.msra.mxu0 %v640
    %642 = vmatprep.subr.mxu0 0.0
    %v643 = vand.u32 %v59, 4294901760
    %644 = vmatpush1.msra.mxu0 %v643
    %645 = vmatprep.subr.mxu0 0.0
    %v646 = vand.u32 %v60, 4294901760
    %647 = vmatpush1.msra.mxu0 %v646
    %648 = vmatprep.subr.mxu0 0.0
    %v649 = vand.u32 %v61, 4294901760
    %650 = vmatpush1.msra.mxu0 %v649
    %v651 = vand.u32 %v70, 4294901760
    %v652 = vsub.f32 %v70, %v651
    %v653 = vand.u32 %v652, 4294901760
    %654 = vmatprep.mubr.f32.mxu0 %v653
    %v655 = vand.u32 %v69, 4294901760
    %v656 = vsub.f32 %v69, %v655
    %v657 = vand.u32 %v656, 4294901760
    %658 = vmatmul.mubr.f32.gmra.mrb[0].mxu0 %v657
    %v659 = vpop.f32.mrb[0].mxu0
    %v660 = vadd.f32 %v552, %v659
    %v661 = vpop.f32.mrb[0].mxu0
    %662 = vdwg.mxu0
    %663 = vmatprep.subr.mxu0 0.0
    %v664 = vand.u32 %v30, 4294901760
    %v665 = vsub.f32 %v30, %v664
    %v666 = vand.u32 %v665, 4294901760
    %667 = vmatpush1.msra.mxu0 %v666
    %668 = vmatprep.subr.mxu0 0.0
    %v669 = vand.u32 %v31, 4294901760
    %v670 = vsub.f32 %v31, %v669
    %v671 = vand.u32 %v670, 4294901760
    %672 = vmatpush1.msra.mxu0 %v671
    %673 = vmatprep.subr.mxu0 0.0
    %v674 = vand.u32 %v32, 4294901760
    %v675 = vsub.f32 %v32, %v674
    %v676 = vand.u32 %v675, 4294901760
    %677 = vmatpush1.msra.mxu0 %v676
    %678 = vmatprep.subr.mxu0 0.0
    %v679 = vand.u32 %v33, 4294901760
    %v680 = vsub.f32 %v33, %v679
    %v681 = vand.u32 %v680, 4294901760
    %682 = vmatpush1.msra.mxu0 %v681
    %683 = vmatprep.subr.mxu0 0.0
    %v684 = vand.u32 %v34, 4294901760
    %v685 = vsub.f32 %v34, %v684
    %v686 = vand.u32 %v685, 4294901760
    %687 = vmatpush1.msra.mxu0 %v686
    %688 = vmatprep.subr.mxu0 0.0
    %v689 = vand.u32 %v35, 4294901760
    %v690 = vsub.f32 %v35, %v689
    %v691 = vand.u32 %v690, 4294901760
    %692 = vmatpush1.msra.mxu0 %v691
    %693 = vmatprep.subr.mxu0 0.0
    %v694 = vand.u32 %v36, 4294901760
    %v695 = vsub.f32 %v36, %v694
    %v696 = vand.u32 %v695, 4294901760
    %697 = vmatpush1.msra.mxu0 %v696
    %698 = vmatprep.subr.mxu0 0.0
    %v699 = vand.u32 %v37, 4294901760
    %v700 = vsub.f32 %v37, %v699
    %v701 = vand.u32 %v700, 4294901760
    %702 = vmatpush1.msra.mxu0 %v701
    %703 = vmatprep.subr.mxu0 0.0
    %v704 = vand.u32 %v38, 4294901760
    %v705 = vsub.f32 %v38, %v704
    %v706 = vand.u32 %v705, 4294901760
    %707 = vmatpush1.msra.mxu0 %v706
    %708 = vmatprep.subr.mxu0 0.0
    %v709 = vand.u32 %v39, 4294901760
    %v710 = vsub.f32 %v39, %v709
    %v711 = vand.u32 %v710, 4294901760
    %712 = vmatpush1.msra.mxu0 %v711
    %713 = vmatprep.subr.mxu0 0.0
    %v714 = vand.u32 %v40, 4294901760
    %v715 = vsub.f32 %v40, %v714
    %v716 = vand.u32 %v715, 4294901760
    %717 = vmatpush1.msra.mxu0 %v716
    %718 = vmatprep.subr.mxu0 0.0
    %v719 = vand.u32 %v41, 4294901760
    %v720 = vsub.f32 %v41, %v719
    %v721 = vand.u32 %v720, 4294901760
    %722 = vmatpush1.msra.mxu0 %v721
    %723 = vmatprep.subr.mxu0 0.0
    %v724 = vand.u32 %v42, 4294901760
    %v725 = vsub.f32 %v42, %v724
    %v726 = vand.u32 %v725, 4294901760
    %727 = vmatpush1.msra.mxu0 %v726
    %728 = vmatprep.subr.mxu0 0.0
    %v729 = vand.u32 %v43, 4294901760
    %v730 = vsub.f32 %v43, %v729
    %v731 = vand.u32 %v730, 4294901760
    %732 = vmatpush1.msra.mxu0 %v731
    %733 = vmatprep.subr.mxu0 0.0
    %v734 = vand.u32 %v44, 4294901760
    %v735 = vsub.f32 %v44, %v734
    %v736 = vand.u32 %v735, 4294901760
    %737 = vmatpush1.msra.mxu0 %v736
    %738 = vmatprep.subr.mxu0 0.0
    %v739 = vand.u32 %v45, 4294901760
    %v740 = vsub.f32 %v45, %v739
    %v741 = vand.u32 %v740, 4294901760
    %742 = vmatpush1.msra.mxu0 %v741
    %743 = vmatprep.subr.mxu0 0.0
    %v744 = vand.u32 %v46, 4294901760
    %v745 = vsub.f32 %v46, %v744
    %v746 = vand.u32 %v745, 4294901760
    %747 = vmatpush1.msra.mxu0 %v746
    %748 = vmatprep.subr.mxu0 0.0
    %v749 = vand.u32 %v47, 4294901760
    %v750 = vsub.f32 %v47, %v749
    %v751 = vand.u32 %v750, 4294901760
    %752 = vmatpush1.msra.mxu0 %v751
    %753 = vmatprep.subr.mxu0 0.0
    %v754 = vand.u32 %v48, 4294901760
    %v755 = vsub.f32 %v48, %v754
    %v756 = vand.u32 %v755, 4294901760
    %757 = vmatpush1.msra.mxu0 %v756
    %758 = vmatprep.subr.mxu0 0.0
    %v759 = vand.u32 %v49, 4294901760
    %v760 = vsub.f32 %v49, %v759
    %v761 = vand.u32 %v760, 4294901760
    %762 = vmatpush1.msra.mxu0 %v761
    %763 = vmatprep.subr.mxu0 0.0
    %v764 = vand.u32 %v50, 4294901760
    %v765 = vsub.f32 %v50, %v764
    %v766 = vand.u32 %v765, 4294901760
    %767 = vmatpush1.msra.mxu0 %v766
    %768 = vmatprep.subr.mxu0 0.0
    %v769 = vand.u32 %v51, 4294901760
    %v770 = vsub.f32 %v51, %v769
    %v771 = vand.u32 %v770, 4294901760
    %772 = vmatpush1.msra.mxu0 %v771
    %773 = vmatprep.subr.mxu0 0.0
    %v774 = vand.u32 %v52, 4294901760
    %v775 = vsub.f32 %v52, %v774
    %v776 = vand.u32 %v775, 4294901760
    %777 = vmatpush1.msra.mxu0 %v776
    %778 = vmatprep.subr.mxu0 0.0
    %v779 = vand.u32 %v53, 4294901760
    %v780 = vsub.f32 %v53, %v779
    %v781 = vand.u32 %v780, 4294901760
    %782 = vmatpush1.msra.mxu0 %v781
    %783 = vmatprep.subr.mxu0 0.0
    %v784 = vand.u32 %v54, 4294901760
    %v785 = vsub.f32 %v54, %v784
    %v786 = vand.u32 %v785, 4294901760
    %787 = vmatpush1.msra.mxu0 %v786
    %788 = vmatprep.subr.mxu0 0.0
    %v789 = vand.u32 %v55, 4294901760
    %v790 = vsub.f32 %v55, %v789
    %v791 = vand.u32 %v790, 4294901760
    %792 = vmatpush1.msra.mxu0 %v791
    %793 = vmatprep.subr.mxu0 0.0
    %v794 = vand.u32 %v56, 4294901760
    %v795 = vsub.f32 %v56, %v794
    %v796 = vand.u32 %v795, 4294901760
    %797 = vmatpush1.msra.mxu0 %v796
    %798 = vmatprep.subr.mxu0 0.0
    %v799 = vand.u32 %v57, 4294901760
    %v800 = vsub.f32 %v57, %v799
    %v801 = vand.u32 %v800, 4294901760
    %802 = vmatpush1.msra.mxu0 %v801
    %803 = vmatprep.subr.mxu0 0.0
    %v804 = vand.u32 %v58, 4294901760
    %v805 = vsub.f32 %v58, %v804
    %v806 = vand.u32 %v805, 4294901760
    %807 = vmatpush1.msra.mxu0 %v806
    %808 = vmatprep.subr.mxu0 0.0
    %v809 = vand.u32 %v59, 4294901760
    %v810 = vsub.f32 %v59, %v809
    %v811 = vand.u32 %v810, 4294901760
    %812 = vmatpush1.msra.mxu0 %v811
    %813 = vmatprep.subr.mxu0 0.0
    %v814 = vand.u32 %v60, 4294901760
    %v815 = vsub.f32 %v60, %v814
    %v816 = vand.u32 %v815, 4294901760
    %817 = vmatpush1.msra.mxu0 %v816
    %818 = vmatprep.subr.mxu0 0.0
    %v819 = vand.u32 %v61, 4294901760
    %v820 = vsub.f32 %v61, %v819
    %v821 = vand.u32 %v820, 4294901760
    %822 = vmatpush1.msra.mxu0 %v821
    %v823 = vand.u32 %v70, 4294901760
    %824 = vmatprep.mubr.f32.mxu0 %v823
    %v825 = vand.u32 %v69, 4294901760
    %826 = vmatmul.mubr.f32.gmra.mrb[0].mxu0 %v825
    %v827 = vpop.f32.mrb[0].mxu0
    %v828 = vadd.f32 %v660, %v827
    %v829 = vpop.f32.mrb[0].mxu0
    %830 = vdwg.mxu0
    %831 = vmatprep.subr.mxu0 0.0
    %v832 = vand.u32 %v30, 4294901760
    %833 = vmatpush1.msra.mxu0 %v832
    %834 = vmatprep.subr.mxu0 0.0
    %v835 = vand.u32 %v31, 4294901760
    %836 = vmatpush1.msra.mxu0 %v835
    %837 = vmatprep.subr.mxu0 0.0
    %v838 = vand.u32 %v32, 4294901760
    %839 = vmatpush1.msra.mxu0 %v838
    %840 = vmatprep.subr.mxu0 0.0
    %v841 = vand.u32 %v33, 4294901760
    %842 = vmatpush1.msra.mxu0 %v841
    %843 = vmatprep.subr.mxu0 0.0
    %v844 = vand.u32 %v34, 4294901760
    %845 = vmatpush1.msra.mxu0 %v844
    %846 = vmatprep.subr.mxu0 0.0
    %v847 = vand.u32 %v35, 4294901760
    %848 = vmatpush1.msra.mxu0 %v847
    %849 = vmatprep.subr.mxu0 0.0
    %v850 = vand.u32 %v36, 4294901760
    %851 = vmatpush1.msra.mxu0 %v850
    %852 = vmatprep.subr.mxu0 0.0
    %v853 = vand.u32 %v37, 4294901760
    %854 = vmatpush1.msra.mxu0 %v853
    %855 = vmatprep.subr.mxu0 0.0
    %v856 = vand.u32 %v38, 4294901760
    %857 = vmatpush1.msra.mxu0 %v856
    %858 = vmatprep.subr.mxu0 0.0
    %v859 = vand.u32 %v39, 4294901760
    %860 = vmatpush1.msra.mxu0 %v859
    %861 = vmatprep.subr.mxu0 0.0
    %v862 = vand.u32 %v40, 4294901760
    %863 = vmatpush1.msra.mxu0 %v862
    %864 = vmatprep.subr.mxu0 0.0
    %v865 = vand.u32 %v41, 4294901760
    %866 = vmatpush1.msra.mxu0 %v865
    %867 = vmatprep.subr.mxu0 0.0
    %v868 = vand.u32 %v42, 4294901760
    %869 = vmatpush1.msra.mxu0 %v868
    %870 = vmatprep.subr.mxu0 0.0
    %v871 = vand.u32 %v43, 4294901760
    %872 = vmatpush1.msra.mxu0 %v871
    %873 = vmatprep.subr.mxu0 0.0
    %v874 = vand.u32 %v44, 4294901760
    %875 = vmatpush1.msra.mxu0 %v874
    %876 = vmatprep.subr.mxu0 0.0
    %v877 = vand.u32 %v45, 4294901760
    %878 = vmatpush1.msra.mxu0 %v877
    %879 = vmatprep.subr.mxu0 0.0
    %v880 = vand.u32 %v46, 4294901760
    %881 = vmatpush1.msra.mxu0 %v880
    %882 = vmatprep.subr.mxu0 0.0
    %v883 = vand.u32 %v47, 4294901760
    %884 = vmatpush1.msra.mxu0 %v883
    %885 = vmatprep.subr.mxu0 0.0
    %v886 = vand.u32 %v48, 4294901760
    %887 = vmatpush1.msra.mxu0 %v886
    %888 = vmatprep.subr.mxu0 0.0
    %v889 = vand.u32 %v49, 4294901760
    %890 = vmatpush1.msra.mxu0 %v889
    %891 = vmatprep.subr.mxu0 0.0
    %v892 = vand.u32 %v50, 4294901760
    %893 = vmatpush1.msra.mxu0 %v892
    %894 = vmatprep.subr.mxu0 0.0
    %v895 = vand.u32 %v51, 4294901760
    %896 = vmatpush1.msra.mxu0 %v895
    %897 = vmatprep.subr.mxu0 0.0
    %v898 = vand.u32 %v52, 4294901760
    %899 = vmatpush1.msra.mxu0 %v898
    %900 = vmatprep.subr.mxu0 0.0
    %v901 = vand.u32 %v53, 4294901760
    %902 = vmatpush1.msra.mxu0 %v901
    %903 = vmatprep.subr.mxu0 0.0
    %v904 = vand.u32 %v54, 4294901760
    %905 = vmatpush1.msra.mxu0 %v904
    %906 = vmatprep.subr.mxu0 0.0
    %v907 = vand.u32 %v55, 4294901760
    %908 = vmatpush1.msra.mxu0 %v907
    %909 = vmatprep.subr.mxu0 0.0
    %v910 = vand.u32 %v56, 4294901760
    %911 = vmatpush1.msra.mxu0 %v910
    %912 = vmatprep.subr.mxu0 0.0
    %v913 = vand.u32 %v57, 4294901760
    %914 = vmatpush1.msra.mxu0 %v913
    %915 = vmatprep.subr.mxu0 0.0
    %v916 = vand.u32 %v58, 4294901760
    %917 = vmatpush1.msra.mxu0 %v916
    %918 = vmatprep.subr.mxu0 0.0
    %v919 = vand.u32 %v59, 4294901760
    %920 = vmatpush1.msra.mxu0 %v919
    %921 = vmatprep.subr.mxu0 0.0
    %v922 = vand.u32 %v60, 4294901760
    %923 = vmatpush1.msra.mxu0 %v922
    %924 = vmatprep.subr.mxu0 0.0
    %v925 = vand.u32 %v61, 4294901760
    %926 = vmatpush1.msra.mxu0 %v925
    %v927 = vand.u32 %v70, 4294901760
    %928 = vmatprep.mubr.f32.mxu0 %v927
    %v929 = vand.u32 %v69, 4294901760
    %930 = vmatmul.mubr.f32.gmra.mrb[0].mxu0 %v929
    %v931 = vpop.f32.mrb[0].mxu0
    %v932 = vadd.f32 %v828, %v931
    %v933 = vpop.f32.mrb[0].mxu0
    %934 = vdwg.mxu0
    %v935 = vmax.f32 %v932, 0.0
    %v936 = vld [vmem:[%s2] sm:$0xff]
    %v937 = vld [vmem:[%s2 + $0x8] sm:$0xff]
    %v938 = vld [vmem:[%s2 + $0x10] sm:$0xff]
    %v939 = vld [vmem:[%s2 + $0x18] sm:$0xff]
    %v940 = vld [vmem:[%s2 + $0x20] sm:$0xff]
    %v941 = vld [vmem:[%s2 + $0x28] sm:$0xff]
    %v942 = vld [vmem:[%s2 + $0x30] sm:$0xff]
    %v943 = vld [vmem:[%s2 + $0x38] sm:$0xff]
    %v944 = vld [vmem:[%s2 + $0x40] sm:$0xff]
    %v945 = vld [vmem:[%s2 + $0x48] sm:$0xff]
    %v946 = vld [vmem:[%s2 + $0x50] sm:$0xff]
    %v947 = vld [vmem:[%s2 + $0x58] sm:$0xff]
    %v948 = vld [vmem:[%s2 + $0x60] sm:$0xff]
    %v949 = vld [vmem:[%s2 + $0x68] sm:$0xff]
    %v950 = vld [vmem:[%s2 + $0x70] sm:$0xff]
    %v951 = vld [vmem:[%s2 + $0x78] sm:$0xff]
    %952 = vmatprep.subr.mxu0 0.0
    %v953 = vand.u32 %v936, 4294901760
    %954 = vmatpush1.msra.mxu0 %v953
    %955 = vmatprep.subr.mxu0 0.0
    %v956 = vand.u32 %v937, 4294901760
    %957 = vmatpush1.msra.mxu0 %v956
    %958 = vmatprep.subr.mxu0 0.0
    %v959 = vand.u32 %v938, 4294901760
    %960 = vmatpush1.msra.mxu0 %v959
    %961 = vmatprep.subr.mxu0 0.0
    %v962 = vand.u32 %v939, 4294901760
    %963 = vmatpush1.msra.mxu0 %v962
    %964 = vmatprep.subr.mxu0 0.0
    %v965 = vand.u32 %v940, 4294901760
    %966 = vmatpush1.msra.mxu0 %v965
    %967 = vmatprep.subr.mxu0 0.0
    %v968 = vand.u32 %v941, 4294901760
    %969 = vmatpush1.msra.mxu0 %v968
    %970 = vmatprep.subr.mxu0 0.0
    %v971 = vand.u32 %v942, 4294901760
    %972 = vmatpush1.msra.mxu0 %v971
    %973 = vmatprep.subr.mxu0 0.0
    %v974 = vand.u32 %v943, 4294901760
    %975 = vmatpush1.msra.mxu0 %v974
    %976 = vmatprep.subr.mxu0 0.0
    %v977 = vand.u32 %v944, 4294901760
    %978 = vmatpush1.msra.mxu0 %v977
    %979 = vmatprep.subr.mxu0 0.0
    %v980 = vand.u32 %v945, 4294901760
    %981 = vmatpush1.msra.mxu0 %v980
    %982 = vmatprep.subr.mxu0 0.0
    %v983 = vand.u32 %v946, 4294901760
    %984 = vmatpush1.msra.mxu0 %v983
    %985 = vmatprep.subr.mxu0 0.0
    %v986 = vand.u32 %v947, 4294901760
    %987 = vmatpush1.msra.mxu0 %v986
    %988 = vmatprep.subr.mxu0 0.0
    %v989 = vand.u32 %v948, 4294901760
    %990 = vmatpush1.msra.mxu0 %v989
    %991 = vmatprep.subr.mxu0 0.0
    %v992 = vand.u32 %v949, 4294901760
    %993 = vmatpush1.msra.mxu0 %v992
    %994 = vmatprep.subr.mxu0 0.0
    %v995 = vand.u32 %v950, 4294901760
    %996 = vmatpush1.msra.mxu0 %v995
    %997 = vmatprep.subr.mxu0 0.0
    %v998 = vand.u32 %v951, 4294901760
    %999 = vmatpush1.msra.mxu0 %v998
    %1000 = vmatprep.subr.mxu0 0.0
    %1001 = vmatpush1.msra.mxu0 0.0
    %1002 = vmatprep.subr.mxu0 0.0
    %1003 = vmatpush1.msra.mxu0 0.0
    %1004 = vmatprep.subr.mxu0 0.0
    %1005 = vmatpush1.msra.mxu0 0.0
    %1006 = vmatprep.subr.mxu0 0.0
    %1007 = vmatpush1.msra.mxu0 0.0
    %1008 = vmatprep.subr.mxu0 0.0
    %1009 = vmatpush1.msra.mxu0 0.0
    %1010 = vmatprep.subr.mxu0 0.0
    %1011 = vmatpush1.msra.mxu0 0.0
    %1012 = vmatprep.subr.mxu0 0.0
    %1013 = vmatpush1.msra.mxu0 0.0
    %1014 = vmatprep.subr.mxu0 0.0
    %1015 = vmatpush1.msra.mxu0 0.0
    %1016 = vmatprep.subr.mxu0 0.0
    %1017 = vmatpush1.msra.mxu0 0.0
    %1018 = vmatprep.subr.mxu0 0.0
    %1019 = vmatpush1.msra.mxu0 0.0
    %1020 = vmatprep.subr.mxu0 0.0
    %1021 = vmatpush1.msra.mxu0 0.0
    %1022 = vmatprep.subr.mxu0 0.0
    %1023 = vmatpush1.msra.mxu0 0.0
    %1024 = vmatprep.subr.mxu0 0.0
    %1025 = vmatpush1.msra.mxu0 0.0
    %1026 = vmatprep.subr.mxu0 0.0
    %1027 = vmatpush1.msra.mxu0 0.0
    %1028 = vmatprep.subr.mxu0 0.0
    %1029 = vmatpush1.msra.mxu0 0.0
    %1030 = vmatprep.subr.mxu0 0.0
    %1031 = vmatpush1.msra.mxu0 0.0
    %1032 = vmatprep.mubr.f32.mxu0 0.0
    %v1033 = vand.u32 %v935, 4294901760
    %v1034 = vsub.f32 %v935, %v1033
    %v1035 = vand.u32 %v1034, 4294901760
    %v1036 = vsub.f32 %v1034, %v1035
    %v1037 = vand.u32 %v1036, 4294901760
    %1038 = vmatmul.mubr.f32.gmra.mrb[0].mxu0 %v1037
    %v1039 = vpop.f32.mrb[0].mxu0
    %v1040 = vadd.f32 0.0, %v1039
    %v1041 = vpop.f32.mrb[0].mxu0
    %1042 = vdwg.mxu0
    %1043 = vmatprep.subr.mxu0 0.0
    %v1044 = vand.u32 %v936, 4294901760
    %v1045 = vsub.f32 %v936, %v1044
    %v1046 = vand.u32 %v1045, 4294901760
    %v1047 = vsub.f32 %v1045, %v1046
    %v1048 = vand.u32 %v1047, 4294901760
    %1049 = vmatpush1.msra.mxu0 %v1048
    %1050 = vmatprep.subr.mxu0 0.0
    %v1051 = vand.u32 %v937, 4294901760
    %v1052 = vsub.f32 %v937, %v1051
    %v1053 = vand.u32 %v1052, 4294901760
    %v1054 = vsub.f32 %v1052, %v1053
    %v1055 = vand.u32 %v1054, 4294901760
    %1056 = vmatpush1.msra.mxu0 %v1055
    %1057 = vmatprep.subr.mxu0 0.0
    %v1058 = vand.u32 %v938, 4294901760
    %v1059 = vsub.f32 %v938, %v1058
    %v1060 = vand.u32 %v1059, 4294901760
    %v1061 = vsub.f32 %v1059, %v1060
    %v1062 = vand.u32 %v1061, 4294901760
    %1063 = vmatpush1.msra.mxu0 %v1062
    %1064 = vmatprep.subr.mxu0 0.0
    %v1065 = vand.u32 %v939, 4294901760
    %v1066 = vsub.f32 %v939, %v1065
    %v1067 = vand.u32 %v1066, 4294901760
    %v1068 = vsub.f32 %v1066, %v1067
    %v1069 = vand.u32 %v1068, 4294901760
    %1070 = vmatpush1.msra.mxu0 %v1069
    %1071 = vmatprep.subr.mxu0 0.0
    %v1072 = vand.u32 %v940, 4294901760
    %v1073 = vsub.f32 %v940, %v1072
    %v1074 = vand.u32 %v1073, 4294901760
    %v1075 = vsub.f32 %v1073, %v1074
    %v1076 = vand.u32 %v1075, 4294901760
    %1077 = vmatpush1.msra.mxu0 %v1076
    %1078 = vmatprep.subr.mxu0 0.0
    %v1079 = vand.u32 %v941, 4294901760
    %v1080 = vsub.f32 %v941, %v1079
    %v1081 = vand.u32 %v1080, 4294901760
    %v1082 = vsub.f32 %v1080, %v1081
    %v1083 = vand.u32 %v1082, 4294901760
    %1084 = vmatpush1.msra.mxu0 %v1083
    %1085 = vmatprep.subr.mxu0 0.0
    %v1086 = vand.u32 %v942, 4294901760
    %v1087 = vsub.f32 %v942, %v1086
    %v1088 = vand.u32 %v1087, 4294901760
    %v1089 = vsub.f32 %v1087, %v1088
    %v1090 = vand.u32 %v1089, 4294901760
    %1091 = vmatpush1.msra.mxu0 %v1090
    %1092 = vmatprep.subr.mxu0 0.0
    %v1093 = vand.u32 %v943, 4294901760
    %v1094 = vsub.f32 %v943, %v1093
    %v1095 = vand.u32 %v1094, 4294901760
    %v1096 = vsub.f32 %v1094, %v1095
    %v1097 = vand.u32 %v1096, 4294901760
    %1098 = vmatpush1.msra.mxu0 %v1097
    %1099 = vmatprep.subr.mxu0 0.0
    %v1100 = vand.u32 %v944, 4294901760
    %v1101 = vsub.f32 %v944, %v1100
    %v1102 = vand.u32 %v1101, 4294901760
    %v1103 = vsub.f32 %v1101, %v1102
    %v1104 = vand.u32 %v1103, 4294901760
    %1105 = vmatpush1.msra.mxu0 %v1104
    %1106 = vmatprep.subr.mxu0 0.0
    %v1107 = vand.u32 %v945, 4294901760
    %v1108 = vsub.f32 %v945, %v1107
    %v1109 = vand.u32 %v1108, 4294901760
    %v1110 = vsub.f32 %v1108, %v1109
    %v1111 = vand.u32 %v1110, 4294901760
    %1112 = vmatpush1.msra.mxu0 %v1111
    %1113 = vmatprep.subr.mxu0 0.0
    %v1114 = vand.u32 %v946, 4294901760
    %v1115 = vsub.f32 %v946, %v1114
    %v1116 = vand.u32 %v1115, 4294901760
    %v1117 = vsub.f32 %v1115, %v1116
    %v1118 = vand.u32 %v1117, 4294901760
    %1119 = vmatpush1.msra.mxu0 %v1118
    %1120 = vmatprep.subr.mxu0 0.0
    %v1121 = vand.u32 %v947, 4294901760
    %v1122 = vsub.f32 %v947, %v1121
    %v1123 = vand.u32 %v1122, 4294901760
    %v1124 = vsub.f32 %v1122, %v1123
    %v1125 = vand.u32 %v1124, 4294901760
    %1126 = vmatpush1.msra.mxu0 %v1125
    %1127 = vmatprep.subr.mxu0 0.0
    %v1128 = vand.u32 %v948, 4294901760
    %v1129 = vsub.f32 %v948, %v1128
    %v1130 = vand.u32 %v1129, 4294901760
    %v1131 = vsub.f32 %v1129, %v1130
    %v1132 = vand.u32 %v1131, 4294901760
    %1133 = vmatpush1.msra.mxu0 %v1132
    %1134 = vmatprep.subr.mxu0 0.0
    %v1135 = vand.u32 %v949, 4294901760
    %v1136 = vsub.f32 %v949, %v1135
    %v1137 = vand.u32 %v1136, 4294901760
    %v1138 = vsub.f32 %v1136, %v1137
    %v1139 = vand.u32 %v1138, 4294901760
    %1140 = vmatpush1.msra.mxu0 %v1139
    %1141 = vmatprep.subr.mxu0 0.0
    %v1142 = vand.u32 %v950, 4294901760
    %v1143 = vsub.f32 %v950, %v1142
    %v1144 = vand.u32 %v1143, 4294901760
    %v1145 = vsub.f32 %v1143, %v1144
    %v1146 = vand.u32 %v1145, 4294901760
    %1147 = vmatpush1.msra.mxu0 %v1146
    %1148 = vmatprep.subr.mxu0 0.0
    %v1149 = vand.u32 %v951, 4294901760
    %v1150 = vsub.f32 %v951, %v1149
    %v1151 = vand.u32 %v1150, 4294901760
    %v1152 = vsub.f32 %v1150, %v1151
    %v1153 = vand.u32 %v1152, 4294901760
    %1154 = vmatpush1.msra.mxu0 %v1153
    %1155 = vmatprep.subr.mxu0 0.0
    %1156 = vmatpush1.msra.mxu0 0.0
    %1157 = vmatprep.subr.mxu0 0.0
    %1158 = vmatpush1.msra.mxu0 0.0
    %1159 = vmatprep.subr.mxu0 0.0
    %1160 = vmatpush1.msra.mxu0 0.0
    %1161 = vmatprep.subr.mxu0 0.0
    %1162 = vmatpush1.msra.mxu0 0.0
    %1163 = vmatprep.subr.mxu0 0.0
    %1164 = vmatpush1.msra.mxu0 0.0
    %1165 = vmatprep.subr.mxu0 0.0
    %1166 = vmatpush1.msra.mxu0 0.0
    %1167 = vmatprep.subr.mxu0 0.0
    %1168 = vmatpush1.msra.mxu0 0.0
    %1169 = vmatprep.subr.mxu0 0.0
    %1170 = vmatpush1.msra.mxu0 0.0
    %1171 = vmatprep.subr.mxu0 0.0
    %1172 = vmatpush1.msra.mxu0 0.0
    %1173 = vmatprep.subr.mxu0 0.0
    %1174 = vmatpush1.msra.mxu0 0.0
    %1175 = vmatprep.subr.mxu0 0.0
    %1176 = vmatpush1.msra.mxu0 0.0
    %1177 = vmatprep.subr.mxu0 0.0
    %1178 = vmatpush1.msra.mxu0 0.0
    %1179 = vmatprep.subr.mxu0 0.0
    %1180 = vmatpush1.msra.mxu0 0.0
    %1181 = vmatprep.subr.mxu0 0.0
    %1182 = vmatpush1.msra.mxu0 0.0
    %1183 = vmatprep.subr.mxu0 0.0
    %1184 = vmatpush1.msra.mxu0 0.0
    %1185 = vmatprep.subr.mxu0 0.0
    %1186 = vmatpush1.msra.mxu0 0.0
    %1187 = vmatprep.mubr.f32.mxu0 0.0
    %v1188 = vand.u32 %v935, 4294901760
    %1189 = vmatmul.mubr.f32.gmra.mrb[0].mxu0 %v1188
    %v1190 = vpop.f32.mrb[0].mxu0
    %v1191 = vadd.f32 %v1040, %v1190
    %v1192 = vpop.f32.mrb[0].mxu0
    %1193 = vdwg.mxu0
    %1194 = vmatprep.subr.mxu0 0.0
    %v1195 = vand.u32 %v936, 4294901760
    %v1196 = vsub.f32 %v936, %v1195
    %1197 = vmatpush1.msra.mxu0 %v1196
    %1198 = vmatprep.subr.mxu0 0.0
    %v1199 = vand.u32 %v937, 4294901760
    %v1200 = vsub.f32 %v937, %v1199
    %1201 = vmatpush1.msra.mxu0 %v1200
    %1202 = vmatprep.subr.mxu0 0.0
    %v1203 = vand.u32 %v938, 4294901760
    %v1204 = vsub.f32 %v938, %v1203
    %1205 = vmatpush1.msra.mxu0 %v1204
    %1206 = vmatprep.subr.mxu0 0.0
    %v1207 = vand.u32 %v939, 4294901760
    %v1208 = vsub.f32 %v939, %v1207
    %1209 = vmatpush1.msra.mxu0 %v1208
    %1210 = vmatprep.subr.mxu0 0.0
    %v1211 = vand.u32 %v940, 4294901760
    %v1212 = vsub.f32 %v940, %v1211
    %1213 = vmatpush1.msra.mxu0 %v1212
    %1214 = vmatprep.subr.mxu0 0.0
    %v1215 = vand.u32 %v941, 4294901760
    %v1216 = vsub.f32 %v941, %v1215
    %1217 = vmatpush1.msra.mxu0 %v1216
    %1218 = vmatprep.subr.mxu0 0.0
    %v1219 = vand.u32 %v942, 4294901760
    %v1220 = vsub.f32 %v942, %v1219
    %1221 = vmatpush1.msra.mxu0 %v1220
    %1222 = vmatprep.subr.mxu0 0.0
    %v1223 = vand.u32 %v943, 4294901760
    %v1224 = vsub.f32 %v943, %v1223
    %1225 = vmatpush1.msra.mxu0 %v1224
    %1226 = vmatprep.subr.mxu0 0.0
    %v1227 = vand.u32 %v944, 4294901760
    %v1228 = vsub.f32 %v944, %v1227
    %1229 = vmatpush1.msra.mxu0 %v1228
    %1230 = vmatprep.subr.mxu0 0.0
    %v1231 = vand.u32 %v945, 4294901760
    %v1232 = vsub.f32 %v945, %v1231
    %1233 = vmatpush1.msra.mxu0 %v1232
    %1234 = vmatprep.subr.mxu0 0.0
    %v1235 = vand.u32 %v946, 4294901760
    %v1236 = vsub.f32 %v946, %v1235
    %1237 = vmatpush1.msra.mxu0 %v1236
    %1238 = vmatprep.subr.mxu0 0.0
    %v1239 = vand.u32 %v947, 4294901760
    %v1240 = vsub.f32 %v947, %v1239
    %1241 = vmatpush1.msra.mxu0 %v1240
    %1242 = vmatprep.subr.mxu0 0.0
    %v1243 = vand.u32 %v948, 4294901760
    %v1244 = vsub.f32 %v948, %v1243
    %1245 = vmatpush1.msra.mxu0 %v1244
    %1246 = vmatprep.subr.mxu0 0.0
    %v1247 = vand.u32 %v949, 4294901760
    %v1248 = vsub.f32 %v949, %v1247
    %1249 = vmatpush1.msra.mxu0 %v1248
    %1250 = vmatprep.subr.mxu0 0.0
    %v1251 = vand.u32 %v950, 4294901760
    %v1252 = vsub.f32 %v950, %v1251
    %1253 = vmatpush1.msra.mxu0 %v1252
    %1254 = vmatprep.subr.mxu0 0.0
    %v1255 = vand.u32 %v951, 4294901760
    %v1256 = vsub.f32 %v951, %v1255
    %1257 = vmatpush1.msra.mxu0 %v1256
    %1258 = vmatprep.subr.mxu0 0.0
    %1259 = vmatpush1.msra.mxu0 0.0
    %1260 = vmatprep.subr.mxu0 0.0
    %1261 = vmatpush1.msra.mxu0 0.0
    %1262 = vmatprep.subr.mxu0 0.0
    %1263 = vmatpush1.msra.mxu0 0.0
    %1264 = vmatprep.subr.mxu0 0.0
    %1265 = vmatpush1.msra.mxu0 0.0
    %1266 = vmatprep.subr.mxu0 0.0
    %1267 = vmatpush1.msra.mxu0 0.0
    %1268 = vmatprep.subr.mxu0 0.0
    %1269 = vmatpush1.msra.mxu0 0.0
    %1270 = vmatprep.subr.mxu0 0.0
    %1271 = vmatpush1.msra.mxu0 0.0
    %1272 = vmatprep.subr.mxu0 0.0
    %1273 = vmatpush1.msra.mxu0 0.0
    %1274 = vmatprep.subr.mxu0 0.0
    %1275 = vmatpush1.msra.mxu0 0.0
    %1276 = vmatprep.subr.mxu0 0.0
    %1277 = vmatpush1.msra.mxu0 0.0
    %1278 = vmatprep.subr.mxu0 0.0
    %1279 = vmatpush1.msra.mxu0 0.0
    %1280 = vmatprep.subr.mxu0 0.0
    %1281 = vmatpush1.msra.mxu0 0.0
    %1282 = vmatprep.subr.mxu0 0.0
    %1283 = vmatpush1.msra.mxu0 0.0
    %1284 = vmatprep.subr.mxu0 0.0
    %1285 = vmatpush1.msra.mxu0 0.0
    %1286 = vmatprep.subr.mxu0 0.0
    %1287 = vmatpush1.msra.mxu0 0.0
    %1288 = vmatprep.subr.mxu0 0.0
    %1289 = vmatpush1.msra.mxu0 0.0
    %1290 = vmatprep.mubr.f32.mxu0 0.0
    %v1291 = vand.u32 %v935, 4294901760
    %v1292 = vsub.f32 %v935, %v1291
    %1293 = vmatmul.mubr.f32.gmra.mrb[0].mxu0 %v1292
    %v1294 = vpop.f32.mrb[0].mxu0
    %v1295 = vadd.f32 %v1191, %v1294
    %v1296 = vpop.f32.mrb[0].mxu0
    %1297 = vdwg.mxu0
    %1298 = vmatprep.subr.mxu0 0.0
    %v1299 = vand.u32 %v936, 4294901760
    %1300 = vmatpush1.msra.mxu0 %v1299
    %1301 = vmatprep.subr.mxu0 0.0
    %v1302 = vand.u32 %v937, 4294901760
    %1303 = vmatpush1.msra.mxu0 %v1302
    %1304 = vmatprep.subr.mxu0 0.0
    %v1305 = vand.u32 %v938, 4294901760
    %1306 = vmatpush1.msra.mxu0 %v1305
    %1307 = vmatprep.subr.mxu0 0.0
    %v1308 = vand.u32 %v939, 4294901760
    %1309 = vmatpush1.msra.mxu0 %v1308
    %1310 = vmatprep.subr.mxu0 0.0
    %v1311 = vand.u32 %v940, 4294901760
    %1312 = vmatpush1.msra.mxu0 %v1311
    %1313 = vmatprep.subr.mxu0 0.0
    %v1314 = vand.u32 %v941, 4294901760
    %1315 = vmatpush1.msra.mxu0 %v1314
    %1316 = vmatprep.subr.mxu0 0.0
    %v1317 = vand.u32 %v942, 4294901760
    %1318 = vmatpush1.msra.mxu0 %v1317
    %1319 = vmatprep.subr.mxu0 0.0
    %v1320 = vand.u32 %v943, 4294901760
    %1321 = vmatpush1.msra.mxu0 %v1320
    %1322 = vmatprep.subr.mxu0 0.0
    %v1323 = vand.u32 %v944, 4294901760
    %1324 = vmatpush1.msra.mxu0 %v1323
    %1325 = vmatprep.subr.mxu0 0.0
    %v1326 = vand.u32 %v945, 4294901760
    %1327 = vmatpush1.msra.mxu0 %v1326
    %1328 = vmatprep.subr.mxu0 0.0
    %v1329 = vand.u32 %v946, 4294901760
    %1330 = vmatpush1.msra.mxu0 %v1329
    %1331 = vmatprep.subr.mxu0 0.0
    %v1332 = vand.u32 %v947, 4294901760
    %1333 = vmatpush1.msra.mxu0 %v1332
    %1334 = vmatprep.subr.mxu0 0.0
    %v1335 = vand.u32 %v948, 4294901760
    %1336 = vmatpush1.msra.mxu0 %v1335
    %1337 = vmatprep.subr.mxu0 0.0
    %v1338 = vand.u32 %v949, 4294901760
    %1339 = vmatpush1.msra.mxu0 %v1338
    %1340 = vmatprep.subr.mxu0 0.0
    %v1341 = vand.u32 %v950, 4294901760
    %1342 = vmatpush1.msra.mxu0 %v1341
    %1343 = vmatprep.subr.mxu0 0.0
    %v1344 = vand.u32 %v951, 4294901760
    %1345 = vmatpush1.msra.mxu0 %v1344
    %1346 = vmatprep.subr.mxu0 0.0
    %1347 = vmatpush1.msra.mxu0 0.0
    %1348 = vmatprep.subr.mxu0 0.0
    %1349 = vmatpush1.msra.mxu0 0.0
    %1350 = vmatprep.subr.mxu0 0.0
    %1351 = vmatpush1.msra.mxu0 0.0
    %1352 = vmatprep.subr.mxu0 0.0
    %1353 = vmatpush1.msra.mxu0 0.0
    %1354 = vmatprep.subr.mxu0 0.0
    %1355 = vmatpush1.msra.mxu0 0.0
    %1356 = vmatprep.subr.mxu0 0.0
    %1357 = vmatpush1.msra.mxu0 0.0
    %1358 = vmatprep.subr.mxu0 0.0
    %1359 = vmatpush1.msra.mxu0 0.0
    %1360 = vmatprep.subr.mxu0 0.0
    %1361 = vmatpush1.msra.mxu0 0.0
    %1362 = vmatprep.subr.mxu0 0.0
    %1363 = vmatpush1.msra.mxu0 0.0
    %1364 = vmatprep.subr.mxu0 0.0
    %1365 = vmatpush1.msra.mxu0 0.0
    %1366 = vmatprep.subr.mxu0 0.0
    %1367 = vmatpush1.msra.mxu0 0.0
    %1368 = vmatprep.subr.mxu0 0.0
    %1369 = vmatpush1.msra.mxu0 0.0
    %1370 = vmatprep.subr.mxu0 0.0
    %1371 = vmatpush1.msra.mxu0 0.0
    %1372 = vmatprep.subr.mxu0 0.0
    %1373 = vmatpush1.msra.mxu0 0.0
    %1374 = vmatprep.subr.mxu0 0.0
    %1375 = vmatpush1.msra.mxu0 0.0
    %1376 = vmatprep.subr.mxu0 0.0
    %1377 = vmatpush1.msra.mxu0 0.0
    %1378 = vmatprep.mubr.f32.mxu0 0.0
    %v1379 = vand.u32 %v935, 4294901760
    %v1380 = vsub.f32 %v935, %v1379
    %v1381 = vand.u32 %v1380, 4294901760
    %1382 = vmatmul.mubr.f32.gmra.mrb[0].mxu0 %v1381
    %v1383 = vpop.f32.mrb[0].mxu0
    %v1384 = vadd.f32 %v1295, %v1383
    %v1385 = vpop.f32.mrb[0].mxu0
    %1386 = vdwg.mxu0
    %1387 = vmatprep.subr.mxu0 0.0
    %v1388 = vand.u32 %v936, 4294901760
    %v1389 = vsub.f32 %v936, %v1388
    %v1390 = vand.u32 %v1389, 4294901760
    %1391 = vmatpush1.msra.mxu0 %v1390
    %1392 = vmatprep.subr.mxu0 0.0
    %v1393 = vand.u32 %v937, 4294901760
    %v1394 = vsub.f32 %v937, %v1393
    %v1395 = vand.u32 %v1394, 4294901760
    %1396 = vmatpush1.msra.mxu0 %v1395
    %1397 = vmatprep.subr.mxu0 0.0
    %v1398 = vand.u32 %v938, 4294901760
    %v1399 = vsub.f32 %v938, %v1398
    %v1400 = vand.u32 %v1399, 4294901760
    %1401 = vmatpush1.msra.mxu0 %v1400
    %1402 = vmatprep.subr.mxu0 0.0
    %v1403 = vand.u32 %v939, 4294901760
    %v1404 = vsub.f32 %v939, %v1403
    %v1405 = vand.u32 %v1404, 4294901760
    %1406 = vmatpush1.msra.mxu0 %v1405
    %1407 = vmatprep.subr.mxu0 0.0
    %v1408 = vand.u32 %v940, 4294901760
    %v1409 = vsub.f32 %v940, %v1408
    %v1410 = vand.u32 %v1409, 4294901760
    %1411 = vmatpush1.msra.mxu0 %v1410
    %1412 = vmatprep.subr.mxu0 0.0
    %v1413 = vand.u32 %v941, 4294901760
    %v1414 = vsub.f32 %v941, %v1413
    %v1415 = vand.u32 %v1414, 4294901760
    %1416 = vmatpush1.msra.mxu0 %v1415
    %1417 = vmatprep.subr.mxu0 0.0
    %v1418 = vand.u32 %v942, 4294901760
    %v1419 = vsub.f32 %v942, %v1418
    %v1420 = vand.u32 %v1419, 4294901760
    %1421 = vmatpush1.msra.mxu0 %v1420
    %1422 = vmatprep.subr.mxu0 0.0
    %v1423 = vand.u32 %v943, 4294901760
    %v1424 = vsub.f32 %v943, %v1423
    %v1425 = vand.u32 %v1424, 4294901760
    %1426 = vmatpush1.msra.mxu0 %v1425
    %1427 = vmatprep.subr.mxu0 0.0
    %v1428 = vand.u32 %v944, 4294901760
    %v1429 = vsub.f32 %v944, %v1428
    %v1430 = vand.u32 %v1429, 4294901760
    %1431 = vmatpush1.msra.mxu0 %v1430
    %1432 = vmatprep.subr.mxu0 0.0
    %v1433 = vand.u32 %v945, 4294901760
    %v1434 = vsub.f32 %v945, %v1433
    %v1435 = vand.u32 %v1434, 4294901760
    %1436 = vmatpush1.msra.mxu0 %v1435
    %1437 = vmatprep.subr.mxu0 0.0
    %v1438 = vand.u32 %v946, 4294901760
    %v1439 = vsub.f32 %v946, %v1438
    %v1440 = vand.u32 %v1439, 4294901760
    %1441 = vmatpush1.msra.mxu0 %v1440
    %1442 = vmatprep.subr.mxu0 0.0
    %v1443 = vand.u32 %v947, 4294901760
    %v1444 = vsub.f32 %v947, %v1443
    %v1445 = vand.u32 %v1444, 4294901760
    %1446 = vmatpush1.msra.mxu0 %v1445
    %1447 = vmatprep.subr.mxu0 0.0
    %v1448 = vand.u32 %v948, 4294901760
    %v1449 = vsub.f32 %v948, %v1448
    %v1450 = vand.u32 %v1449, 4294901760
    %1451 = vmatpush1.msra.mxu0 %v1450
    %1452 = vmatprep.subr.mxu0 0.0
    %v1453 = vand.u32 %v949, 4294901760
    %v1454 = vsub.f32 %v949, %v1453
    %v1455 = vand.u32 %v1454, 4294901760
    %1456 = vmatpush1.msra.mxu0 %v1455
    %1457 = vmatprep.subr.mxu0 0.0
    %v1458 = vand.u32 %v950, 4294901760
    %v1459 = vsub.f32 %v950, %v1458
    %v1460 = vand.u32 %v1459, 4294901760
    %1461 = vmatpush1.msra.mxu0 %v1460
    %1462 = vmatprep.subr.mxu0 0.0
    %v1463 = vand.u32 %v951, 4294901760
    %v1464 = vsub.f32 %v951, %v1463
    %v1465 = vand.u32 %v1464, 4294901760
    %1466 = vmatpush1.msra.mxu0 %v1465
    %1467 = vmatprep.subr.mxu0 0.0
    %1468 = vmatpush1.msra.mxu0 0.0
    %1469 = vmatprep.subr.mxu0 0.0
    %1470 = vmatpush1.msra.mxu0 0.0
    %1471 = vmatprep.subr.mxu0 0.0
    %1472 = vmatpush1.msra.mxu0 0.0
    %1473 = vmatprep.subr.mxu0 0.0
    %1474 = vmatpush1.msra.mxu0 0.0
    %1475 = vmatprep.subr.mxu0 0.0
    %1476 = vmatpush1.msra.mxu0 0.0
    %1477 = vmatprep.subr.mxu0 0.0
    %1478 = vmatpush1.msra.mxu0 0.0
    %1479 = vmatprep.subr.mxu0 0.0
    %1480 = vmatpush1.msra.mxu0 0.0
    %1481 = vmatprep.subr.mxu0 0.0
    %1482 = vmatpush1.msra.mxu0 0.0
    %1483 = vmatprep.subr.mxu0 0.0
    %1484 = vmatpush1.msra.mxu0 0.0
    %1485 = vmatprep.subr.mxu0 0.0
    %1486 = vmatpush1.msra.mxu0 0.0
    %1487 = vmatprep.subr.mxu0 0.0
    %1488 = vmatpush1.msra.mxu0 0.0
    %1489 = vmatprep.subr.mxu0 0.0
    %1490 = vmatpush1.msra.mxu0 0.0
    %1491 = vmatprep.subr.mxu0 0.0
    %1492 = vmatpush1.msra.mxu0 0.0
    %1493 = vmatprep.subr.mxu0 0.0
    %1494 = vmatpush1.msra.mxu0 0.0
    %1495 = vmatprep.subr.mxu0 0.0
    %1496 = vmatpush1.msra.mxu0 0.0
    %1497 = vmatprep.subr.mxu0 0.0
    %1498 = vmatpush1.msra.mxu0 0.0
    %1499 = vmatprep.mubr.f32.mxu0 0.0
    %v1500 = vand.u32 %v935, 4294901760
    %1501 = vmatmul.mubr.f32.gmra.mrb[0].mxu0 %v1500
    %v1502 = vpop.f32.mrb[0].mxu0
    %v1503 = vadd.f32 %v1384, %v1502
    %v1504 = vpop.f32.mrb[0].mxu0
    %1505 = vdwg.mxu0
    %1506 = vmatprep.subr.mxu0 0.0
    %v1507 = vand.u32 %v936, 4294901760
    %1508 = vmatpush1.msra.mxu0 %v1507
    %1509 = vmatprep.subr.mxu0 0.0
    %v1510 = vand.u32 %v937, 4294901760
    %1511 = vmatpush1.msra.mxu0 %v1510
    %1512 = vmatprep.subr.mxu0 0.0
    %v1513 = vand.u32 %v938, 4294901760
    %1514 = vmatpush1.msra.mxu0 %v1513
    %1515 = vmatprep.subr.mxu0 0.0
    %v1516 = vand.u32 %v939, 4294901760
    %1517 = vmatpush1.msra.mxu0 %v1516
    %1518 = vmatprep.subr.mxu0 0.0
    %v1519 = vand.u32 %v940, 4294901760
    %1520 = vmatpush1.msra.mxu0 %v1519
    %1521 = vmatprep.subr.mxu0 0.0
    %v1522 = vand.u32 %v941, 4294901760
    %1523 = vmatpush1.msra.mxu0 %v1522
    %1524 = vmatprep.subr.mxu0 0.0
    %v1525 = vand.u32 %v942, 4294901760
    %1526 = vmatpush1.msra.mxu0 %v1525
    %1527 = vmatprep.subr.mxu0 0.0
    %v1528 = vand.u32 %v943, 4294901760
    %1529 = vmatpush1.msra.mxu0 %v1528
    %1530 = vmatprep.subr.mxu0 0.0
    %v1531 = vand.u32 %v944, 4294901760
    %1532 = vmatpush1.msra.mxu0 %v1531
    %1533 = vmatprep.subr.mxu0 0.0
    %v1534 = vand.u32 %v945, 4294901760
    %1535 = vmatpush1.msra.mxu0 %v1534
    %1536 = vmatprep.subr.mxu0 0.0
    %v1537 = vand.u32 %v946, 4294901760
    %1538 = vmatpush1.msra.mxu0 %v1537
    %1539 = vmatprep.subr.mxu0 0.0
    %v1540 = vand.u32 %v947, 4294901760
    %1541 = vmatpush1.msra.mxu0 %v1540
    %1542 = vmatprep.subr.mxu0 0.0
    %v1543 = vand.u32 %v948, 4294901760
    %1544 = vmatpush1.msra.mxu0 %v1543
    %1545 = vmatprep.subr.mxu0 0.0
    %v1546 = vand.u32 %v949, 4294901760
    %1547 = vmatpush1.msra.mxu0 %v1546
    %1548 = vmatprep.subr.mxu0 0.0
    %v1549 = vand.u32 %v950, 4294901760
    %1550 = vmatpush1.msra.mxu0 %v1549
    %1551 = vmatprep.subr.mxu0 0.0
    %v1552 = vand.u32 %v951, 4294901760
    %1553 = vmatpush1.msra.mxu0 %v1552
    %1554 = vmatprep.subr.mxu0 0.0
    %1555 = vmatpush1.msra.mxu0 0.0
    %1556 = vmatprep.subr.mxu0 0.0
    %1557 = vmatpush1.msra.mxu0 0.0
    %1558 = vmatprep.subr.mxu0 0.0
    %1559 = vmatpush1.msra.mxu0 0.0
    %1560 = vmatprep.subr.mxu0 0.0
    %1561 = vmatpush1.msra.mxu0 0.0
    %1562 = vmatprep.subr.mxu0 0.0
    %1563 = vmatpush1.msra.mxu0 0.0
    %1564 = vmatprep.subr.mxu0 0.0
    %1565 = vmatpush1.msra.mxu0 0.0
    %1566 = vmatprep.subr.mxu0 0.0
    %1567 = vmatpush1.msra.mxu0 0.0
    %1568 = vmatprep.subr.mxu0 0.0
    %1569 = vmatpush1.msra.mxu0 0.0
    %1570 = vmatprep.subr.mxu0 0.0
    %1571 = vmatpush1.msra.mxu0 0.0
    %1572 = vmatprep.subr.mxu0 0.0
    %1573 = vmatpush1.msra.mxu0 0.0
    %1574 = vmatprep.subr.mxu0 0.0
    %1575 = vmatpush1.msra.mxu0 0.0
    %1576 = vmatprep.subr.mxu0 0.0
    %1577 = vmatpush1.msra.mxu0 0.0
    %1578 = vmatprep.subr.mxu0 0.0
    %1579 = vmatpush1.msra.mxu0 0.0
    %1580 = vmatprep.subr.mxu0 0.0
    %1581 = vmatpush1.msra.mxu0 0.0
    %1582 = vmatprep.subr.mxu0 0.0
    %1583 = vmatpush1.msra.mxu0 0.0
    %1584 = vmatprep.subr.mxu0 0.0
    %1585 = vmatpush1.msra.mxu0 0.0
    %1586 = vmatprep.mubr.f32.mxu0 0.0
    %v1587 = vand.u32 %v935, 4294901760
    %1588 = vmatmul.mubr.f32.gmra.mrb[0].mxu0 %v1587
    %v1589 = vpop.f32.mrb[0].mxu0
    %v1590 = vadd.f32 %v1503, %v1589
    %v1591 = vpop.f32.mrb[0].mxu0
    %1592 = vdwg.mxu0
    %vm1593 = vcmask 254976
    %1594 = vst.msk [vmem:[#allocation5] sm:$0x3] %vm1593, %v1590
    // Predicated region
    $region18: #{tpu_custom_call.1} parent=1 // pred_check
      _
    $region19: #{tpu_custom_call.1} parent=1 // pred_check_branch
      %1596 = sbr.rel (0) target = $region21
    $region20: #{tpu_custom_call.1} parent=1 // pred_region
      %s1598 = ssub.s32 32, 32
      %1599 = vsyncadd [#allocation4], %s1598
      %s1601 = sshll.u32 [#allocation5], 4
      %s1602 = int_to_ptr.vmem [resolvable:$true] %s1601
      %1604 = dma.vmem_to_hbm [thread:$0]  %s1602, 32, %s3, [#allocation4]
    $region21: #{tpu_custom_call.1} parent=1 // pred_fallthru
      _
    // Predicated region
    $region22: #{tpu_custom_call.1} parent=1 // pred_check
      _
    $region23: #{tpu_custom_call.1} parent=1 // pred_check_branch
      %1606 = sbr.rel (0) target = $region25
    $region24: #{tpu_custom_call.1} parent=1 // pred_region
      %1607 = dma.done [#allocation4], 32
    $region25: #{tpu_custom_call.1} parent=1 // pred_fallthru
      _
    %1608 = vsyncpa [#allocation3], 1
    %1609 = vsyncpa [#allocation4], 1

</llo_original>
